<compile_context>
chip_gen: v6e
topology: v6e:2x2x1
jax: 0.10.0
libtpu: 0.0.40
codegen_flags: <defaults>
</compile_context>

<pallas_src>
import functools

import jax
import jax.numpy as jnp
from jax.experimental import pallas as pl
from jax.experimental.pallas import tpu as pltpu

EPS = 1e-2  # finite-difference step used only when use_exact_jvp=False


def _ij_loss_kernel(xk_ref, rhs_ref, A_ref, b_ref, w_smem, out_ref, *,
                    inner_iterations, outer_iterations, base_weight,
                    use_exact_jvp):
    A = A_ref[...]            # (D, D)  f32, resident across the whole grid
    b = b_ref[...]            # (1, D)
    xk = xk_ref[...]          # (TN, D)

    # ---- hoisted per-tile part of F ----------------------------------------
    #   F(x) = tanh(x @ A + b) - x
    xkAb = jnp.dot(xk, A, preferred_element_type=jnp.float32) + b   # (TN, D)
    t0 = jnp.tanh(xkAb)                                             # (TN, D)
    # xk is dead from here on.

    if use_exact_jvp:
        # Exact directional derivative (the f64/EPS->0 limit of the original):
        #   dF_w(w) = tanh'(xk@A+b) * (w@A) - w = s * (w@A) - w
        s = 1.0 - t0 * t0          # sech^2, (TN, D); xkAb/t0 die here
        A_mm = A.astype(jnp.bfloat16)   # bf16 MXU operand, f32 accumulation

        def dF_w(w):
            wA = jnp.dot(w.astype(jnp.bfloat16), A_mm,
                         preferred_element_type=jnp.float32)
            return s * wA - w
    else:
        # Finite-difference form (kept for strict FD semantics; f32 only).
        inv_eps = 1.0 / EPS

        def dF_w(w):
            wA = jnp.dot(w, A, preferred_element_type=jnp.float32)
            return (jnp.tanh(xkAb + EPS * wA) - t0) * inv_eps - w

    # rhs is re-read lazily from its VMEM ref to keep the live vreg set small.
    loss_acc = jnp.zeros(xk.shape, jnp.float32)   # elementwise weighted r*r

    w = jnp.zeros_like(xk)
    # resid(0) = dF_w(0) - rhs = -rhs exactly (for both dF_w forms).
    V = -rhs_ref[...]
    for k in range(outer_iterations):
        # ---- InverseJacobianLayer.forward((xk, rhs, w)) ----
        wp = w + w_smem[0] * V
        for n in range(1, inner_iterations):
            V = dF_w(V)                   # v_n : Krylov-like recursion
            wp = wp + w_smem[n] * V
        w = wp
        # ---- weighted squared-residual loss term ----
        # r is bit-identical to the v_0 of the next outer iteration: reuse it.
        r = dF_w(w) - rhs_ref[...]
        loss_acc = loss_acc + (base_weight ** k) * (r * r)
        V = r

    # single cross-sublane reduction per tile -> lane-dense (1, 1, D) partials
    out_ref[...] = jnp.sum(loss_acc, axis=0, keepdims=True)[None]


def _pick_tile_n(N, requested):
    tn = min(requested, N)
    # keep >= 2 grid blocks so the "parallel" axis shards across both v7x TCs
    if N >= 16 and N // tn < 2:
        tn = N // 2
    tn = max(8, (tn // 8) * 8)
    while N % tn != 0 and tn > 8:
        tn -= 8
    return tn


def inverse_jacobian_loss(xk, rhs, A, b, weights, *, inner_iterations,
                          outer_iterations, base_weight=4.0, tile_n=256,
                          use_exact_jvp=True):
    N, D = xk.shape
    tile_n = _pick_tile_n(N, tile_n)
    assert N % tile_n == 0 and tile_n % 8 == 0 and D % 128 == 0
    num_blocks = N // tile_n

    # only raise the scoped-VMEM limit when the working set actually needs it
    est_bytes = 4 * (2 * 2 * tile_n * D      # xk/rhs tiles, double-buffered
                     + 2 * (D * D + D)       # A, b (double-buffered)
                     + 8 * tile_n * D        # in-kernel live (s, w, V, r, acc)
                     + 2 * D)                # output partials
    vmem_limit = None
    if est_bytes > 30 * 1024 * 1024:
        vmem_limit = int(min(2 * est_bytes, 96 * 1024 * 1024))

    kernel = functools.partial(
        _ij_loss_kernel,
        inner_iterations=inner_iterations,
        outer_iterations=outer_iterations,
        base_weight=base_weight,
        use_exact_jvp=use_exact_jvp,
    )
    partials = pl.pallas_call(
        kernel,
        out_shape=jax.ShapeDtypeStruct((num_blocks, 1, D), jnp.float32),
        grid=(num_blocks,),
        in_specs=[
            pl.BlockSpec((tile_n, D), lambda i: (i, 0)),   # xk tile
            pl.BlockSpec((tile_n, D), lambda i: (i, 0)),   # rhs tile
            pl.BlockSpec((D, D), lambda i: (0, 0)),        # A (F's linear map)
            pl.BlockSpec((1, D), lambda i: (0, 0)),        # b (F's bias)
            pl.BlockSpec(memory_space=pltpu.MemorySpace.SMEM),  # layer weights
        ],
        # per-block lane-dense partial sums -> no shared accumulator,
        # grid axis can run fully parallel (megacore / 2-TC sharding)
        out_specs=pl.BlockSpec((1, 1, D), lambda i: (i, 0, 0)),
        compiler_params=pltpu.CompilerParams(
            dimension_semantics=("parallel",),
            vmem_limit_bytes=vmem_limit),
    )(xk, rhs, A, b, weights)
    # avg_loss = loss / N_data  (final lane/block reduction + divide in XLA)
    return jnp.sum(partials) / N


def reference_loss(xk, rhs, A, b, weights, *, inner_iterations,
                   outer_iterations, base_weight=4.0, use_exact_jvp=True):
    """Pure-JAX mirror of the PyTorch forward (un-optimized, for checking)."""
    hi = jax.lax.Precision.HIGHEST

    def F(x):
        return jnp.tanh(jnp.dot(x, A, precision=hi) + b) - x

    Fxk = F(xk)
    if use_exact_jvp:
        t0 = jnp.tanh(jnp.dot(xk, A, precision=hi) + b)
        s = 1.0 - t0 * t0
        dF_w = lambda w: s * jnp.dot(w, A, precision=hi) - w
    else:
        dF_w = lambda w: (F(xk + EPS * w) - Fxk) / EPS
    resid = lambda w: dF_w(w) - rhs

    w = jnp.zeros_like(xk)
    loss = 0.0
    for k in range(outer_iterations):
        V = resid(w)
        wp = w + weights[0] * V
        for n in range(1, inner_iterations):
            V = dF_w(V)
            wp = wp + weights[n] * V
        w = wp
        r = resid(w)
        loss = loss + base_weight ** k * jnp.sum(r * r)
    return loss / rhs.shape[0]


if __name__ == "__main__":
    key = jax.random.PRNGKey(0)
    k1, k2, k3, k4, k5 = jax.random.split(key, 5)

    N, D = 256, 128                       # -> 2 grid blocks of 128 rows
    inner_iterations, outer_iterations = 4, 3
    base_weight = 4.0

    xk = jax.random.normal(k1, (N, D), jnp.float32)
    rhs = 0.1 * jax.random.normal(k2, (N, D), jnp.float32)
    # deterministic synthetic parameters of F
    A = jax.random.normal(k3, (D, D), jnp.float32) / jnp.sqrt(D)
    b = 0.1 * jax.random.normal(k4, (1, D), jnp.float32)
    # deterministic (non-degenerate) layer weights — original inits to zeros
    weights = 0.05 * jax.random.normal(k5, (inner_iterations,), jnp.float32)

    loss = inverse_jacobian_loss(
        xk, rhs, A, b, weights,
        inner_iterations=inner_iterations,
        outer_iterations=outer_iterations,
        base_weight=base_weight,
    )
    loss = jax.block_until_ready(loss)

    ref = reference_loss(
        xk, rhs, A, b, weights,
        inner_iterations=inner_iterations,
        outer_iterations=outer_iterations,
        base_weight=base_weight,
    )

    assert jnp.isfinite(loss), f"non-finite loss: {loss}"
    rel_err = jnp.abs(loss - ref) / (jnp.abs(ref) + 1e-8)
    assert rel_err < 5e-2, f"mismatch: pallas={loss}, ref={ref}, rel={rel_err}"
    print("KERNEL_OK")
</pallas_src>

<mosaic_0001>
module attributes {stable_mosaic.version = 11 : i64} {
  func.func @_ij_loss_kernel(%arg0: i32, %arg1: memref<128x128xf32, #tpu.memory_space<vmem>>, %arg2: memref<128x128xf32, #tpu.memory_space<vmem>>, %arg3: memref<128x128xf32, #tpu.memory_space<vmem>>, %arg4: memref<1x128xf32, #tpu.memory_space<vmem>>, %arg5: memref<4xf32, #tpu.memory_space<smem>>, %arg6: memref<1x1x128xf32, #tpu.memory_space<vmem>>) attributes {dimension_semantics = [#tpu.dimension_semantics<parallel>], iteration_bounds = array<i64: 2>, scalar_prefetch = 0 : i64, scratch_operands = 0 : i64, tpu.core_type = #tpu.core_type<tc>, window_params = [{transform_indices = @transform_0, window_bounds = array<i64: 128, 128>}, {transform_indices = @transform_1, window_bounds = array<i64: 128, 128>}, {pipeline_mode = #tpu.pipeline_mode<synchronous>, transform_indices = @transform_2, window_bounds = array<i64: 128, 128>}, {pipeline_mode = #tpu.pipeline_mode<synchronous>, transform_indices = @transform_3, window_bounds = array<i64: 1, 128>}, {transform_indices = @transform_4, window_bounds = array<i64: 4>}, {transform_indices = @transform_5, window_bounds = array<i64: 1, 1, 128>}]} {
    %c0 = arith.constant 0 : index
    %c0_0 = arith.constant 0 : index
    %0 = vector.load %arg3[%c0, %c0_0] : memref<128x128xf32, #tpu.memory_space<vmem>>, vector<128x128xf32>
    %c0_1 = arith.constant 0 : index
    %c0_2 = arith.constant 0 : index
    %1 = vector.load %arg4[%c0_1, %c0_2] : memref<1x128xf32, #tpu.memory_space<vmem>>, vector<1x128xf32>
    %c0_3 = arith.constant 0 : index
    %c0_4 = arith.constant 0 : index
    %2 = vector.load %arg1[%c0_3, %c0_4] : memref<128x128xf32, #tpu.memory_space<vmem>>, vector<128x128xf32>
    %cst = arith.constant dense<0.000000e+00> : vector<128x128xf32>
    %3 = tpu.matmul %2, %0, %cst {dimension_numbers = #tpu.dot_dimension_numbers<[1], [0], [0], [1], [0, 0, 1, 1], [], []>} : vector<128x128xf32>, vector<128x128xf32>, vector<128x128xf32> -> vector<128x128xf32>
    %4 = vector.broadcast %1 : vector<1x128xf32> to vector<128x128xf32>
    %5 = arith.addf %3, %4 : vector<128x128xf32>
    %6 = math.tanh %5 : vector<128x128xf32>
    %7 = arith.mulf %6, %6 : vector<128x128xf32>
    %cst_5 = arith.constant 1.000000e+00 : f32
    %8 = vector.broadcast %cst_5 : f32 to vector<128x128xf32>
    %9 = arith.subf %8, %7 : vector<128x128xf32>
    %10 = arith.truncf %0 : vector<128x128xf32> to vector<128x128xbf16>
    %cst_6 = arith.constant 0.000000e+00 : f32
    %11 = vector.broadcast %cst_6 : f32 to vector<128x128xf32>
    %cst_7 = arith.constant 0.000000e+00 : f32
    %12 = vector.broadcast %cst_7 : f32 to vector<128x128xf32>
    %c0_8 = arith.constant 0 : index
    %c0_9 = arith.constant 0 : index
    %13 = vector.load %arg2[%c0_8, %c0_9] : memref<128x128xf32, #tpu.memory_space<vmem>>, vector<128x128xf32>
    %cst_10 = arith.constant 0.000000e+00 : f32
    %14 = vector.broadcast %cst_10 : f32 to vector<128x128xf32>
    %15 = arith.subf %14, %13 : vector<128x128xf32>
    %c0_11 = arith.constant 0 : index
    %16 = memref.load %arg5[%c0_11] : memref<4xf32, #tpu.memory_space<smem>>
    %17 = vector.broadcast %16 : f32 to vector<128x128xf32>
    %18 = arith.mulf %17, %15 : vector<128x128xf32>
    %19 = arith.addf %12, %18 : vector<128x128xf32>
    %20 = arith.truncf %15 : vector<128x128xf32> to vector<128x128xbf16>
    %cst_12 = arith.constant dense<0.000000e+00> : vector<128x128xf32>
    %21 = tpu.matmul %20, %10, %cst_12 {dimension_numbers = #tpu.dot_dimension_numbers<[1], [0], [0], [1], [0, 0, 1, 1], [], []>} : vector<128x128xbf16>, vector<128x128xbf16>, vector<128x128xf32> -> vector<128x128xf32>
    %22 = arith.mulf %9, %21 : vector<128x128xf32>
    %23 = arith.subf %22, %15 : vector<128x128xf32>
    %c1 = arith.constant 1 : index
    %24 = memref.load %arg5[%c1] : memref<4xf32, #tpu.memory_space<smem>>
    %25 = vector.broadcast %24 : f32 to vector<128x128xf32>
    %26 = arith.mulf %25, %23 : vector<128x128xf32>
    %27 = arith.addf %19, %26 : vector<128x128xf32>
    %28 = arith.truncf %23 : vector<128x128xf32> to vector<128x128xbf16>
    %cst_13 = arith.constant dense<0.000000e+00> : vector<128x128xf32>
    %29 = tpu.matmul %28, %10, %cst_13 {dimension_numbers = #tpu.dot_dimension_numbers<[1], [0], [0], [1], [0, 0, 1, 1], [], []>} : vector<128x128xbf16>, vector<128x128xbf16>, vector<128x128xf32> -> vector<128x128xf32>
    %30 = arith.mulf %9, %29 : vector<128x128xf32>
    %31 = arith.subf %30, %23 : vector<128x128xf32>
    %c2 = arith.constant 2 : index
    %32 = memref.load %arg5[%c2] : memref<4xf32, #tpu.memory_space<smem>>
    %33 = vector.broadcast %32 : f32 to vector<128x128xf32>
    %34 = arith.mulf %33, %31 : vector<128x128xf32>
    %35 = arith.addf %27, %34 : vector<128x128xf32>
    %36 = arith.truncf %31 : vector<128x128xf32> to vector<128x128xbf16>
    %cst_14 = arith.constant dense<0.000000e+00> : vector<128x128xf32>
    %37 = tpu.matmul %36, %10, %cst_14 {dimension_numbers = #tpu.dot_dimension_numbers<[1], [0], [0], [1], [0, 0, 1, 1], [], []>} : vector<128x128xbf16>, vector<128x128xbf16>, vector<128x128xf32> -> vector<128x128xf32>
    %38 = arith.mulf %9, %37 : vector<128x128xf32>
    %39 = arith.subf %38, %31 : vector<128x128xf32>
    %c3 = arith.constant 3 : index
    %40 = memref.load %arg5[%c3] : memref<4xf32, #tpu.memory_space<smem>>
    %41 = vector.broadcast %40 : f32 to vector<128x128xf32>
    %42 = arith.mulf %41, %39 : vector<128x128xf32>
    %43 = arith.addf %35, %42 : vector<128x128xf32>
    %44 = arith.truncf %43 : vector<128x128xf32> to vector<128x128xbf16>
    %cst_15 = arith.constant dense<0.000000e+00> : vector<128x128xf32>
    %45 = tpu.matmul %44, %10, %cst_15 {dimension_numbers = #tpu.dot_dimension_numbers<[1], [0], [0], [1], [0, 0, 1, 1], [], []>} : vector<128x128xbf16>, vector<128x128xbf16>, vector<128x128xf32> -> vector<128x128xf32>
    %46 = arith.mulf %9, %45 : vector<128x128xf32>
    %47 = arith.subf %46, %43 : vector<128x128xf32>
    %c0_16 = arith.constant 0 : index
    %c0_17 = arith.constant 0 : index
    %48 = vector.load %arg2[%c0_16, %c0_17] : memref<128x128xf32, #tpu.memory_space<vmem>>, vector<128x128xf32>
    %49 = arith.subf %47, %48 : vector<128x128xf32>
    %50 = arith.mulf %49, %49 : vector<128x128xf32>
    %cst_18 = arith.constant 1.000000e+00 : f32
    %51 = vector.broadcast %cst_18 : f32 to vector<128x128xf32>
    %52 = arith.mulf %51, %50 : vector<128x128xf32>
    %53 = arith.addf %11, %52 : vector<128x128xf32>
    %c0_19 = arith.constant 0 : index
    %54 = memref.load %arg5[%c0_19] : memref<4xf32, #tpu.memory_space<smem>>
    %55 = vector.broadcast %54 : f32 to vector<128x128xf32>
    %56 = arith.mulf %55, %49 : vector<128x128xf32>
    %57 = arith.addf %43, %56 : vector<128x128xf32>
    %58 = arith.truncf %49 : vector<128x128xf32> to vector<128x128xbf16>
    %cst_20 = arith.constant dense<0.000000e+00> : vector<128x128xf32>
    %59 = tpu.matmul %58, %10, %cst_20 {dimension_numbers = #tpu.dot_dimension_numbers<[1], [0], [0], [1], [0, 0, 1, 1], [], []>} : vector<128x128xbf16>, vector<128x128xbf16>, vector<128x128xf32> -> vector<128x128xf32>
    %60 = arith.mulf %9, %59 : vector<128x128xf32>
    %61 = arith.subf %60, %49 : vector<128x128xf32>
    %c1_21 = arith.constant 1 : index
    %62 = memref.load %arg5[%c1_21] : memref<4xf32, #tpu.memory_space<smem>>
    %63 = vector.broadcast %62 : f32 to vector<128x128xf32>
    %64 = arith.mulf %63, %61 : vector<128x128xf32>
    %65 = arith.addf %57, %64 : vector<128x128xf32>
    %66 = arith.truncf %61 : vector<128x128xf32> to vector<128x128xbf16>
    %cst_22 = arith.constant dense<0.000000e+00> : vector<128x128xf32>
    %67 = tpu.matmul %66, %10, %cst_22 {dimension_numbers = #tpu.dot_dimension_numbers<[1], [0], [0], [1], [0, 0, 1, 1], [], []>} : vector<128x128xbf16>, vector<128x128xbf16>, vector<128x128xf32> -> vector<128x128xf32>
    %68 = arith.mulf %9, %67 : vector<128x128xf32>
    %69 = arith.subf %68, %61 : vector<128x128xf32>
    %c2_23 = arith.constant 2 : index
    %70 = memref.load %arg5[%c2_23] : memref<4xf32, #tpu.memory_space<smem>>
    %71 = vector.broadcast %70 : f32 to vector<128x128xf32>
    %72 = arith.mulf %71, %69 : vector<128x128xf32>
    %73 = arith.addf %65, %72 : vector<128x128xf32>
    %74 = arith.truncf %69 : vector<128x128xf32> to vector<128x128xbf16>
    %cst_24 = arith.constant dense<0.000000e+00> : vector<128x128xf32>
    %75 = tpu.matmul %74, %10, %cst_24 {dimension_numbers = #tpu.dot_dimension_numbers<[1], [0], [0], [1], [0, 0, 1, 1], [], []>} : vector<128x128xbf16>, vector<128x128xbf16>, vector<128x128xf32> -> vector<128x128xf32>
    %76 = arith.mulf %9, %75 : vector<128x128xf32>
    %77 = arith.subf %76, %69 : vector<128x128xf32>
    %c3_25 = arith.constant 3 : index
    %78 = memref.load %arg5[%c3_25] : memref<4xf32, #tpu.memory_space<smem>>
    %79 = vector.broadcast %78 : f32 to vector<128x128xf32>
    %80 = arith.mulf %79, %77 : vector<128x128xf32>
    %81 = arith.addf %73, %80 : vector<128x128xf32>
    %82 = arith.truncf %81 : vector<128x128xf32> to vector<128x128xbf16>
    %cst_26 = arith.constant dense<0.000000e+00> : vector<128x128xf32>
    %83 = tpu.matmul %82, %10, %cst_26 {dimension_numbers = #tpu.dot_dimension_numbers<[1], [0], [0], [1], [0, 0, 1, 1], [], []>} : vector<128x128xbf16>, vector<128x128xbf16>, vector<128x128xf32> -> vector<128x128xf32>
    %84 = arith.mulf %9, %83 : vector<128x128xf32>
    %85 = arith.subf %84, %81 : vector<128x128xf32>
    %c0_27 = arith.constant 0 : index
    %c0_28 = arith.constant 0 : index
    %86 = vector.load %arg2[%c0_27, %c0_28] : memref<128x128xf32, #tpu.memory_space<vmem>>, vector<128x128xf32>
    %87 = arith.subf %85, %86 : vector<128x128xf32>
    %88 = arith.mulf %87, %87 : vector<128x128xf32>
    %cst_29 = arith.constant 4.000000e+00 : f32
    %89 = vector.broadcast %cst_29 : f32 to vector<128x128xf32>
    %90 = arith.mulf %89, %88 : vector<128x128xf32>
    %91 = arith.addf %53, %90 : vector<128x128xf32>
    %c0_30 = arith.constant 0 : index
    %92 = memref.load %arg5[%c0_30] : memref<4xf32, #tpu.memory_space<smem>>
    %93 = vector.broadcast %92 : f32 to vector<128x128xf32>
    %94 = arith.mulf %93, %87 : vector<128x128xf32>
    %95 = arith.addf %81, %94 : vector<128x128xf32>
    %96 = arith.truncf %87 : vector<128x128xf32> to vector<128x128xbf16>
    %cst_31 = arith.constant dense<0.000000e+00> : vector<128x128xf32>
    %97 = tpu.matmul %96, %10, %cst_31 {dimension_numbers = #tpu.dot_dimension_numbers<[1], [0], [0], [1], [0, 0, 1, 1], [], []>} : vector<128x128xbf16>, vector<128x128xbf16>, vector<128x128xf32> -> vector<128x128xf32>
    %98 = arith.mulf %9, %97 : vector<128x128xf32>
    %99 = arith.subf %98, %87 : vector<128x128xf32>
    %c1_32 = arith.constant 1 : index
    %100 = memref.load %arg5[%c1_32] : memref<4xf32, #tpu.memory_space<smem>>
    %101 = vector.broadcast %100 : f32 to vector<128x128xf32>
    %102 = arith.mulf %101, %99 : vector<128x128xf32>
    %103 = arith.addf %95, %102 : vector<128x128xf32>
    %104 = arith.truncf %99 : vector<128x128xf32> to vector<128x128xbf16>
    %cst_33 = arith.constant dense<0.000000e+00> : vector<128x128xf32>
    %105 = tpu.matmul %104, %10, %cst_33 {dimension_numbers = #tpu.dot_dimension_numbers<[1], [0], [0], [1], [0, 0, 1, 1], [], []>} : vector<128x128xbf16>, vector<128x128xbf16>, vector<128x128xf32> -> vector<128x128xf32>
    %106 = arith.mulf %9, %105 : vector<128x128xf32>
    %107 = arith.subf %106, %99 : vector<128x128xf32>
    %c2_34 = arith.constant 2 : index
    %108 = memref.load %arg5[%c2_34] : memref<4xf32, #tpu.memory_space<smem>>
    %109 = vector.broadcast %108 : f32 to vector<128x128xf32>
    %110 = arith.mulf %109, %107 : vector<128x128xf32>
    %111 = arith.addf %103, %110 : vector<128x128xf32>
    %112 = arith.truncf %107 : vector<128x128xf32> to vector<128x128xbf16>
    %cst_35 = arith.constant dense<0.000000e+00> : vector<128x128xf32>
    %113 = tpu.matmul %112, %10, %cst_35 {dimension_numbers = #tpu.dot_dimension_numbers<[1], [0], [0], [1], [0, 0, 1, 1], [], []>} : vector<128x128xbf16>, vector<128x128xbf16>, vector<128x128xf32> -> vector<128x128xf32>
    %114 = arith.mulf %9, %113 : vector<128x128xf32>
    %115 = arith.subf %114, %107 : vector<128x128xf32>
    %c3_36 = arith.constant 3 : index
    %116 = memref.load %arg5[%c3_36] : memref<4xf32, #tpu.memory_space<smem>>
    %117 = vector.broadcast %116 : f32 to vector<128x128xf32>
    %118 = arith.mulf %117, %115 : vector<128x128xf32>
    %119 = arith.addf %111, %118 : vector<128x128xf32>
    %120 = arith.truncf %119 : vector<128x128xf32> to vector<128x128xbf16>
    %cst_37 = arith.constant dense<0.000000e+00> : vector<128x128xf32>
    %121 = tpu.matmul %120, %10, %cst_37 {dimension_numbers = #tpu.dot_dimension_numbers<[1], [0], [0], [1], [0, 0, 1, 1], [], []>} : vector<128x128xbf16>, vector<128x128xbf16>, vector<128x128xf32> -> vector<128x128xf32>
    %122 = arith.mulf %9, %121 : vector<128x128xf32>
    %123 = arith.subf %122, %119 : vector<128x128xf32>
    %c0_38 = arith.constant 0 : index
    %c0_39 = arith.constant 0 : index
    %124 = vector.load %arg2[%c0_38, %c0_39] : memref<128x128xf32, #tpu.memory_space<vmem>>, vector<128x128xf32>
    %125 = arith.subf %123, %124 : vector<128x128xf32>
    %126 = arith.mulf %125, %125 : vector<128x128xf32>
    %cst_40 = arith.constant 1.600000e+01 : f32
    %127 = vector.broadcast %cst_40 : f32 to vector<128x128xf32>
    %128 = arith.mulf %127, %126 : vector<128x128xf32>
    %129 = arith.addf %91, %128 : vector<128x128xf32>
    %cst_41 = arith.constant dense<0.000000e+00> : vector<128xf32>
    %130 = vector.multi_reduction <add>, %129, %cst_41 [0] : vector<128x128xf32> to vector<128xf32>
    %131 = vector.shape_cast %130 : vector<128xf32> to vector<1x128xf32>
    %132 = vector.shape_cast %131 : vector<1x128xf32> to vector<1x1x128xf32>
    %c0_42 = arith.constant 0 : index
    %c0_43 = arith.constant 0 : index
    %c0_44 = arith.constant 0 : index
    %133 = vector.load %arg6[%c0_42, %c0_43, %c0_44] : memref<1x1x128xf32, #tpu.memory_space<vmem>>, vector<1x1x128xf32>
    tpu.vector_store %arg6[%c0_42, %c0_43, %c0_44], %132 {strides = array<i32>} : memref<1x1x128xf32, #tpu.memory_space<vmem>>, vector<1x1x128xf32>,
    return
  }
  func.func @transform_0(%arg0: i32) -> (i32, i32) {
    %c0_i32 = arith.constant 0 : i32
    %c0_i32_0 = arith.constant 0 : i32
    return %arg0, %c0_i32 : i32, i32
  }
  func.func @transform_1(%arg0: i32) -> (i32, i32) {
    %c0_i32 = arith.constant 0 : i32
    %c0_i32_0 = arith.constant 0 : i32
    return %arg0, %c0_i32 : i32, i32
  }
  func.func @transform_2(%arg0: i32) -> (i32, i32) {
    %c0_i32 = arith.constant 0 : i32
    %c0_i32_0 = arith.constant 0 : i32
    %c0_i32_1 = arith.constant 0 : i32
    return %c0_i32, %c0_i32_0 : i32, i32
  }
  func.func @transform_3(%arg0: i32) -> (i32, i32) {
    %c0_i32 = arith.constant 0 : i32
    %c0_i32_0 = arith.constant 0 : i32
    %c0_i32_1 = arith.constant 0 : i32
    return %c0_i32, %c0_i32_0 : i32, i32
  }
  func.func @transform_4(%arg0: i32) -> i32 {
    %c0_i32 = arith.constant 0 : i32
    %c0_i32_0 = arith.constant 0 : i32
    return %c0_i32 : i32
  }
  func.func @transform_5(%arg0: i32) -> (i32, i32, i32) {
    %c0_i32 = arith.constant 0 : i32
    %c0_i32_0 = arith.constant 0 : i32
    %c0_i32_1 = arith.constant 0 : i32
    return %arg0, %c0_i32, %c0_i32_0 : i32, i32, i32
  }
}

</mosaic_0001>

<llo_original>
// kernel: tpu_custom_call.1
$region0: #{tpu_custom_call.1}
  #allocation0 [shape = 'u32[]', space=smem, size = 0x4, offset = 0x4, fixed_abs, tag = 'smem constant byte address 0x4 - core index']
  #allocation1 [shape = 'u32[144,128]{1,0:T(1,128)}', space=vmem, size = 0x12000, scoped, tag = 'internal scratch']
  %s0 = inlined_call_operand.hbm [shape: f32[256,128], index: 0, kind: input, shape index: {}]
  %s1 = inlined_call_operand.hbm [shape: f32[256,128], index: 1, kind: input, shape index: {}]
  %s2 = inlined_call_operand.hbm [shape: f32[128,128], index: 2, kind: input, shape index: {}]
  %s3 = inlined_call_operand.vmem [shape: f32[1,128], index: 3, kind: input, shape index: {}]
  %s4 = inlined_call_operand.vmem [shape: f32[4], index: 4, kind: input, shape index: {}]
  %s5 = inlined_call_operand.hbm [shape: f32[2,1,128], index: 5, kind: output, shape index: {}]
  %s6 = sld [smem:[#allocation0]]
  $region69: #{tpu_custom_call.1} parent=0
    _
  %s8 = ssub.s32 1, %s6
  %s9 = scalar_select 0, %s8, %s6
  $region1: #{tpu_custom_call.1} parent=0
    #allocation2 [shape = 'u8[131072]{0}', space=vmem, size = 0x20000, scoped, tag = 'input window, operand 0']
    #allocation3 [shape = 's32[2]{0}', space=sflag, size = 0x8, scoped, tag = 'scoped memory for tpu_custom_call.1']
    #allocation4 [shape = 's32[2]{0}', space=sflag, size = 0x8, scoped, tag = 'scoped memory for tpu_custom_call.1']
    #allocation5 [shape = 's32[2]{0}', space=sflag, size = 0x8, scoped, tag = 'scoped memory for tpu_custom_call.1']
    #allocation6 [shape = 'u8[131072]{0}', space=vmem, size = 0x20000, scoped, tag = 'input window, operand 1']
    #allocation7 [shape = 's32[2]{0}', space=sflag, size = 0x8, scoped, tag = 'scoped memory for tpu_custom_call.1']
    #allocation8 [shape = 'u8[65536]{0}', space=vmem, size = 0x10000, scoped, tag = 'input window, operand 2, single buffered']
    #allocation9 [shape = 'u8[512]{0}', space=smem, size = 0x200, scoped, tag = 'input window, operand 4, single buffered']
    #allocation10 [shape = 'u8[1024]{0}', space=vmem, size = 0x400, scoped, tag = 'output window, operand 0']
    %10 = vsyncpa [#allocation3], 0
    %s11 = scalar_lea.sflag [#allocation3], 1
    %12 = vsyncpa %s11, 0
    %13 = vsyncpa [#allocation7], 0
    %s14 = scalar_lea.sflag [#allocation7], 1
    %15 = vsyncpa %s14, 0
    %16 = vsyncpa [#allocation5], 0
    %17 = vsyncpa [#allocation4], 0
    %s18 = scalar_lea.sflag [#allocation4], 1
    %19 = vsyncpa %s18, 0
    loop: start=0, step=1, limit=4
    $region2: #{tpu_custom_call.1} parent=1 // loop_pre_header
      _
    $region3: #{tpu_custom_call.1} parent=1 // loop_header
      %s21 = sphi 0, %s25
      %p22 = scmp.ge.s32.totalorder %s21, 4
      %s31 = sphi 0, %s33
      %s34 = sphi 0, %s31
      %s35 = sphi 0, %s34
      %s51 = sphi 0, %s35
      %s57 = sphi 0, %s59
      %s60 = sphi 0, %s57
      %s61 = sphi 0, %s60
      %s77 = sphi 0, %s61
      %s81 = sphi 0, %s81
      %s83 = sphi 0, %s81
      %s84 = sphi 0, %s83
      %s98 = sphi 0, %s84
      %s102 = sphi 0, %s102
      %s104 = sphi 0, %s102
      %s105 = sphi 0, %s104
      %s119 = sphi 0, %s105
      %s123 = sphi 0, %s123
      %s125 = sphi 0, %s123
      %s126 = sphi 0, %s125
      %s140 = sphi 0, %s126
      %s146 = sphi 0, %s148
      %s149 = sphi 0, %s146
      %s150 = sphi 0, %s149
      %s166 = sphi 0, %s150
    $region4: #{tpu_custom_call.1} parent=1 // loop_header_branch
      %24 = sbr.rel (%p22) target = $region8
    $region5: #{tpu_custom_call.1} parent=1 // loop_body
      %s26 = ssub.s32 %s21, 1
      %s27 = ssub.s32 %s21, 2
      %s28 = sadd.s32 %s21, 1
      %s29 = ssub.s32 %s21, %s28
      %p30 = scmp.eq.s32.totalorder %s29, 0
      %s32 = sadd.s32 %s31, 1
      %s33 = scalar_select %p30, %s31, %s32
      %p36 = pneg %p30
      %p37 = scmp.eq.s32.totalorder %s21, 1
      %p38 = por %p36, %p37
      %p39 = scmp.ne.s32.totalorder %s31, %s34
      %p40 = scmp.eq.s32.totalorder %s21, 0
      %p41 = por %p39, %p40
      %p42 = scmp.ne.s32.totalorder %s31, %s34
      %p43 = scmp.eq.s32.totalorder %s26, 1
      %p44 = por %p42, %p43
      %p45 = scmp.ne.s32.totalorder %s34, %s35
      %p46 = scmp.eq.s32.totalorder %s26, 0
      %p47 = por %p45, %p46
      %p48 = scmp.ne.s32.totalorder %s34, %s35
      %p49 = scmp.eq.s32.totalorder %s27, 1
      %p50 = por %p48, %p49
      %p52 = scmp.ne.s32.totalorder %s35, %s51
      %p53 = scmp.eq.s32.totalorder %s27, 0
      %p54 = por %p52, %p53
      %s55 = ssub.s32 %s21, %s28
      %p56 = scmp.eq.s32.totalorder %s55, 0
      %s58 = sadd.s32 %s57, 1
      %s59 = scalar_select %p56, %s57, %s58
      %p62 = pneg %p56
      %p63 = scmp.eq.s32.totalorder %s21, 1
      %p64 = por %p62, %p63
      %p65 = scmp.ne.s32.totalorder %s57, %s60
      %p66 = scmp.eq.s32.totalorder %s21, 0
      %p67 = por %p65, %p66
      %p68 = scmp.ne.s32.totalorder %s57, %s60
      %p69 = scmp.eq.s32.totalorder %s26, 1
      %p70 = por %p68, %p69
      %p71 = scmp.ne.s32.totalorder %s60, %s61
      %p72 = scmp.eq.s32.totalorder %s26, 0
      %p73 = por %p71, %p72
      %p74 = scmp.ne.s32.totalorder %s60, %s61
      %p75 = scmp.eq.s32.totalorder %s27, 1
      %p76 = por %p74, %p75
      %p78 = scmp.ne.s32.totalorder %s61, %s77
      %p79 = scmp.eq.s32.totalorder %s27, 0
      %p80 = por %p78, %p79
      %s82 = sadd.s32 %s81, 1
      %p85 = scmp.eq.s32.totalorder %s21, 1
      %p86 = scmp.ne.s32.totalorder %s81, %s83
      %p87 = scmp.eq.s32.totalorder %s21, 0
      %p88 = por %p86, %p87
      %p89 = scmp.ne.s32.totalorder %s81, %s83
      %p90 = scmp.eq.s32.totalorder %s26, 1
      %p91 = por %p89, %p90
      %p92 = scmp.ne.s32.totalorder %s83, %s84
      %p93 = scmp.eq.s32.totalorder %s26, 0
      %p94 = por %p92, %p93
      %p95 = scmp.ne.s32.totalorder %s83, %s84
      %p96 = scmp.eq.s32.totalorder %s27, 1
      %p97 = por %p95, %p96
      %p99 = scmp.ne.s32.totalorder %s84, %s98
      %p100 = scmp.eq.s32.totalorder %s27, 0
      %p101 = por %p99, %p100
      %s103 = sadd.s32 %s102, 1
      %p106 = scmp.eq.s32.totalorder %s21, 1
      %p107 = scmp.ne.s32.totalorder %s102, %s104
      %p108 = scmp.eq.s32.totalorder %s21, 0
      %p109 = por %p107, %p108
      %p110 = scmp.ne.s32.totalorder %s102, %s104
      %p111 = scmp.eq.s32.totalorder %s26, 1
      %p112 = por %p110, %p111
      %p113 = scmp.ne.s32.totalorder %s104, %s105
      %p114 = scmp.eq.s32.totalorder %s26, 0
      %p115 = por %p113, %p114
      %p116 = scmp.ne.s32.totalorder %s104, %s105
      %p117 = scmp.eq.s32.totalorder %s27, 1
      %p118 = por %p116, %p117
      %p120 = scmp.ne.s32.totalorder %s105, %s119
      %p121 = scmp.eq.s32.totalorder %s27, 0
      %p122 = por %p120, %p121
      %s124 = sadd.s32 %s123, 1
      %p127 = scmp.eq.s32.totalorder %s21, 1
      %p128 = scmp.ne.s32.totalorder %s123, %s125
      %p129 = scmp.eq.s32.totalorder %s21, 0
      %p130 = por %p128, %p129
      %p131 = scmp.ne.s32.totalorder %s123, %s125
      %p132 = scmp.eq.s32.totalorder %s26, 1
      %p133 = por %p131, %p132
      %p134 = scmp.ne.s32.totalorder %s125, %s126
      %p135 = scmp.eq.s32.totalorder %s26, 0
      %p136 = por %p134, %p135
      %p137 = scmp.ne.s32.totalorder %s125, %s126
      %p138 = scmp.eq.s32.totalorder %s27, 1
      %p139 = por %p137, %p138
      %p141 = scmp.ne.s32.totalorder %s126, %s140
      %p142 = scmp.eq.s32.totalorder %s27, 0
      %p143 = por %p141, %p142
      %s144 = ssub.s32 %s21, %s28
      %p145 = scmp.eq.s32.totalorder %s144, 0
      %s147 = sadd.s32 %s146, 1
      %s148 = scalar_select %p145, %s146, %s147
      %p151 = pneg %p145
      %p152 = scmp.eq.s32.totalorder %s21, 1
      %p153 = por %p151, %p152
      %p154 = scmp.ne.s32.totalorder %s146, %s149
      %p155 = scmp.eq.s32.totalorder %s21, 0
      %p156 = por %p154, %p155
      %p157 = scmp.ne.s32.totalorder %s146, %s149
      %p158 = scmp.eq.s32.totalorder %s26, 1
      %p159 = por %p157, %p158
      %p160 = scmp.ne.s32.totalorder %s149, %s150
      %p161 = scmp.eq.s32.totalorder %s26, 0
      %p162 = por %p160, %p161
      %p163 = scmp.ne.s32.totalorder %s149, %s150
      %p164 = scmp.eq.s32.totalorder %s27, 1
      %p165 = por %p163, %p164
      %p167 = scmp.ne.s32.totalorder %s150, %s166
      %p168 = scmp.eq.s32.totalorder %s27, 0
      %p169 = por %p167, %p168
      %p170 = scmp.le.s32.totalorder 1, %s21
      %p171 = scmp.lt.s32.totalorder %s21, 3
      %p172 = pnand %p170, %p171
      %p173 = pneg %p172
      // Predicated region
      $region9: #{tpu_custom_call.1} parent=5 // pred_check
        _
      $region10: #{tpu_custom_call.1} parent=5 // pred_check_branch
        %175 = sbr.rel (%p172) target = $region12
      $region11: #{tpu_custom_call.1} parent=5 // pred_region
        %s176 = ssub.s32 %s21, 1
        // Predicated region
        $region13: #{tpu_custom_call.1} parent=11 // pred_check
          %p177 = pneg %p94
        $region14: #{tpu_custom_call.1} parent=11 // pred_check_branch
          %179 = sbr.rel (%p177) target = $region16
        $region15: #{tpu_custom_call.1} parent=11 // pred_region
          %s181 = ssub.s32 2048, 2048
          %182 = vsyncadd [#allocation7], %s181
          %s183 = sshll.u32 [#allocation8], 4
          %s184 = int_to_ptr.vmem [resolvable:$true] %s183
          %189 = dma.hbm_to_vmem [thread:$0]  %s2, 2048, %s184, [#allocation7], 128, 128, 8
        $region16: #{tpu_custom_call.1} parent=11 // pred_fallthru
          _
        // Predicated region
        $region17: #{tpu_custom_call.1} parent=11 // pred_check
          %p190 = pneg %p115
        $region18: #{tpu_custom_call.1} parent=11 // pred_check_branch
          %192 = sbr.rel (%p190) target = $region20
        $region19: #{tpu_custom_call.1} parent=11 // pred_region
          _
        $region20: #{tpu_custom_call.1} parent=11 // pred_fallthru
          _
        // Predicated region
        $region21: #{tpu_custom_call.1} parent=11 // pred_check
          %p193 = pneg %p136
        $region22: #{tpu_custom_call.1} parent=11 // pred_check_branch
          %195 = sbr.rel (%p193) target = $region24
        $region23: #{tpu_custom_call.1} parent=11 // pred_region
          %s197 = ssub.s32 16, 16
          %198 = vsyncadd [#allocation5], %s197
          %s200 = sshll.u32 %s4, 4
          %s201 = int_to_ptr.vmem [resolvable:$true] %s200
          %203 = dma.vmem_to_smem %s201, 16, [#allocation9], [#allocation5]
        $region24: #{tpu_custom_call.1} parent=11 // pred_fallthru
          _
      $region12: #{tpu_custom_call.1} parent=5 // pred_fallthru
        _
      %p204 = scmp.lt.s32.totalorder %s21, 2
      // Predicated region
      $region25: #{tpu_custom_call.1} parent=5 // pred_check
        %p205 = pneg %p204
      $region26: #{tpu_custom_call.1} parent=5 // pred_check_branch
        %207 = sbr.rel (%p205) target = $region28
      $region27: #{tpu_custom_call.1} parent=5 // pred_region
        // Predicated region
        $region29: #{tpu_custom_call.1} parent=27 // pred_check
          %p208 = pneg %p41
        $region30: #{tpu_custom_call.1} parent=27 // pred_check_branch
          %210 = sbr.rel (%p208) target = $region32
        $region31: #{tpu_custom_call.1} parent=27 // pred_region
          %s211 = sand.u32 %s31, 1
          %s212 = scalar_lea.sflag [#allocation3], %s211
          %s213 = sand.u32 %s31, 1
          %s214 = smul.addr %s213, 128
          %s215 = scalar_lea.vmem [#allocation2], %s214
          %s216 = smul.u32 16, %s21
          %s218 = ssub.s32 2048, 2048
          %219 = vsyncadd %s212, %s218
          %s220 = smul.addr %s216, 128
          %s221 = scalar_lea.hbm %s0, %s220
          %s222 = sshll.u32 %s215, 4
          %s223 = int_to_ptr.vmem [resolvable:$true] %s222
          %228 = dma.hbm_to_vmem [thread:$0]  %s221, 2048, %s223, %s212, 128, 128, 8
        $region32: #{tpu_custom_call.1} parent=27 // pred_fallthru
          _
        // Predicated region
        $region33: #{tpu_custom_call.1} parent=27 // pred_check
          %p229 = pneg %p67
        $region34: #{tpu_custom_call.1} parent=27 // pred_check_branch
          %231 = sbr.rel (%p229) target = $region36
        $region35: #{tpu_custom_call.1} parent=27 // pred_region
          %s232 = sand.u32 %s21, 1
          %s233 = scalar_lea.sflag [#allocation7], %s232
          %s234 = sand.u32 %s57, 1
          %s235 = smul.addr %s234, 128
          %s236 = scalar_lea.vmem [#allocation6], %s235
          %s237 = smul.u32 16, %s21
          %s239 = ssub.s32 2048, 2048
          %240 = vsyncadd %s233, %s239
          %s241 = smul.addr %s237, 128
          %s242 = scalar_lea.hbm %s1, %s241
          %s243 = sshll.u32 %s236, 4
          %s244 = int_to_ptr.vmem [resolvable:$true] %s243
          %249 = dma.hbm_to_vmem [thread:$0]  %s242, 2048, %s244, %s233, 128, 128, 8
        $region36: #{tpu_custom_call.1} parent=27 // pred_fallthru
          _
      $region28: #{tpu_custom_call.1} parent=5 // pred_fallthru
        _
      %p250 = scmp.le.s32.totalorder 1, %s21
      %p251 = scmp.lt.s32.totalorder %s21, 3
      %p252 = pnand %p250, %p251
      %p253 = pneg %p252
      // Predicated region
      $region37: #{tpu_custom_call.1} parent=5 // pred_check
        _
      $region38: #{tpu_custom_call.1} parent=5 // pred_check_branch
        %255 = sbr.rel (%p252) target = $region40
      $region39: #{tpu_custom_call.1} parent=5 // pred_region
        %s256 = ssub.s32 %s21, 1
        %s257 = sand.u32 %s34, 1
        %s258 = scalar_lea.sflag [#allocation3], %s257
        %s259 = sand.u32 %s34, 1
        %s260 = smul.addr %s259, 128
        %s261 = scalar_lea.vmem [#allocation2], %s260
        // Predicated region
        $region41: #{tpu_custom_call.1} parent=39 // pred_check
          %p262 = pneg %p47
        $region42: #{tpu_custom_call.1} parent=39 // pred_check_branch
          %264 = sbr.rel (%p262) target = $region44
        $region43: #{tpu_custom_call.1} parent=39 // pred_region
          %265 = dma.done %s258, 2048
        $region44: #{tpu_custom_call.1} parent=39 // pred_fallthru
          _
        %s266 = sand.u32 %s26, 1
        %s267 = scalar_lea.sflag [#allocation7], %s266
        %s268 = sand.u32 %s60, 1
        %s269 = smul.addr %s268, 128
        %s270 = scalar_lea.vmem [#allocation6], %s269
        // Predicated region
        $region45: #{tpu_custom_call.1} parent=39 // pred_check
          %p271 = pneg %p73
        $region46: #{tpu_custom_call.1} parent=39 // pred_check_branch
          %273 = sbr.rel (%p271) target = $region48
        $region47: #{tpu_custom_call.1} parent=39 // pred_region
          %274 = dma.done %s267, 2048
        $region48: #{tpu_custom_call.1} parent=39 // pred_fallthru
          _
        // Predicated region
        $region49: #{tpu_custom_call.1} parent=39 // pred_check
          %p275 = pneg %p94
        $region50: #{tpu_custom_call.1} parent=39 // pred_check_branch
          %277 = sbr.rel (%p275) target = $region52
        $region51: #{tpu_custom_call.1} parent=39 // pred_region
          %278 = dma.done [#allocation7], 2048
        $region52: #{tpu_custom_call.1} parent=39 // pred_fallthru
          _
        // Predicated region
        $region53: #{tpu_custom_call.1} parent=39 // pred_check
          %p279 = pneg %p136
        $region54: #{tpu_custom_call.1} parent=39 // pred_check_branch
          %281 = sbr.rel (%p279) target = $region56
        $region55: #{tpu_custom_call.1} parent=39 // pred_region
          %282 = dma.done [#allocation5], 16
        $region56: #{tpu_custom_call.1} parent=39 // pred_fallthru
          _
        %283 = sfence
        %s284 = sand.u32 %s34, 1
        %s285 = scalar_lea.sflag [#allocation3], %s284
        %s286 = sand.u32 %s34, 1
        %s287 = smul.addr %s286, 128
        %s288 = scalar_lea.vmem [#allocation2], %s287
        %p289 = pneg %p47
        %p290 = pneg %p44
        %s291 = sand.u32 %s26, 1
        %s292 = scalar_lea.sflag [#allocation7], %s291
        %s293 = sand.u32 %s60, 1
        %s294 = smul.addr %s293, 128
        %s295 = scalar_lea.vmem [#allocation6], %s294
        %p296 = pneg %p73
        %p297 = pneg %p70
        %p298 = pneg %p94
        %p299 = pneg %p91
        %p300 = pneg %p115
        %p301 = pneg %p112
        %p302 = pneg %p136
        %p303 = pneg %p133
        %p304 = pneg %p162
        %p305 = pneg %p159
        %s306 = sand.u32 %s149, 1
        %s307 = scalar_lea.sflag [#allocation4], %s306
        %s308 = sand.u32 %s149, 1
        %s309 = scalar_lea.vmem [#allocation10], %s308
        %s310 = smul.u32 16, %s26
        %s311 = smul.u32 16, %s26
        %v313 = vld [vmem:[#allocation8] sm:$0xff]
        %v314 = vld [vmem:[#allocation8 + $0x8] sm:$0xff]
        %v315 = vld [vmem:[#allocation8 + $0x10] sm:$0xff]
        %v316 = vld [vmem:[#allocation8 + $0x18] sm:$0xff]
        %v317 = vld [vmem:[#allocation8 + $0x20] sm:$0xff]
        %v318 = vld [vmem:[#allocation8 + $0x28] sm:$0xff]
        %v319 = vld [vmem:[#allocation8 + $0x30] sm:$0xff]
        %v320 = vld [vmem:[#allocation8 + $0x38] sm:$0xff]
        %v321 = vld [vmem:[#allocation8 + $0x40] sm:$0xff]
        %v322 = vld [vmem:[#allocation8 + $0x48] sm:$0xff]
        %v323 = vld [vmem:[#allocation8 + $0x50] sm:$0xff]
        %v324 = vld [vmem:[#allocation8 + $0x58] sm:$0xff]
        %v325 = vld [vmem:[#allocation8 + $0x60] sm:$0xff]
        %v326 = vld [vmem:[#allocation8 + $0x68] sm:$0xff]
        %v327 = vld [vmem:[#allocation8 + $0x70] sm:$0xff]
        %v328 = vld [vmem:[#allocation8 + $0x78] sm:$0xff]
        %v329 = vld [vmem:[%s3] sm:$0x1]
        %v330 = vld [vmem:[%s261] sm:$0xff]
        %v331 = vld [vmem:[%s261 + $0x8] sm:$0xff]
        %v332 = vld [vmem:[%s261 + $0x10] sm:$0xff]
        %v333 = vld [vmem:[%s261 + $0x18] sm:$0xff]
        %v334 = vld [vmem:[%s261 + $0x20] sm:$0xff]
        %v335 = vld [vmem:[%s261 + $0x28] sm:$0xff]
        %v336 = vld [vmem:[%s261 + $0x30] sm:$0xff]
        %v337 = vld [vmem:[%s261 + $0x38] sm:$0xff]
        %v338 = vld [vmem:[%s261 + $0x40] sm:$0xff]
        %v339 = vld [vmem:[%s261 + $0x48] sm:$0xff]
        %v340 = vld [vmem:[%s261 + $0x50] sm:$0xff]
        %v341 = vld [vmem:[%s261 + $0x58] sm:$0xff]
        %v342 = vld [vmem:[%s261 + $0x60] sm:$0xff]
        %v343 = vld [vmem:[%s261 + $0x68] sm:$0xff]
        %v344 = vld [vmem:[%s261 + $0x70] sm:$0xff]
        %v345 = vld [vmem:[%s261 + $0x78] sm:$0xff]
        %v347 = vlaneseq
        %v348 = vshrl.u32 %v347, 7
        %v349 = vsub.s32 0, %v348
        %v350 = vrot.slane %v329, %v349
        %352 = vmatprep.subr.mxu0 0.0
        %353 = vmatpush1.msra.mxu0 %v328
        %354 = vmatprep.subr.mxu0 0.0
        %355 = vmatpush1.msra.mxu0 %v327
        %356 = vmatprep.subr.mxu0 0.0
        %357 = vmatpush1.msra.mxu0 %v326
        %358 = vmatprep.subr.mxu0 0.0
        %359 = vmatpush1.msra.mxu0 %v325
        %360 = vmatprep.subr.mxu0 0.0
        %361 = vmatpush1.msra.mxu0 %v324
        %362 = vmatprep.subr.mxu0 0.0
        %363 = vmatpush1.msra.mxu0 %v323
        %364 = vmatprep.subr.mxu0 0.0
        %365 = vmatpush1.msra.mxu0 %v322
        %366 = vmatprep.subr.mxu0 0.0
        %367 = vmatpush1.msra.mxu0 %v321
        %368 = vmatprep.subr.mxu0 0.0
        %369 = vmatpush1.msra.mxu0 %v320
        %370 = vmatprep.subr.mxu0 0.0
        %371 = vmatpush1.msra.mxu0 %v319
        %372 = vmatprep.subr.mxu0 0.0
        %373 = vmatpush1.msra.mxu0 %v318
        %374 = vmatprep.subr.mxu0 0.0
        %375 = vmatpush1.msra.mxu0 %v317
        %376 = vmatprep.subr.mxu0 0.0
        %377 = vmatpush1.msra.mxu0 %v316
        %378 = vmatprep.subr.mxu0 0.0
        %379 = vmatpush1.msra.mxu0 %v315
        %380 = vmatprep.subr.mxu0 0.0
        %381 = vmatpush1.msra.mxu0 %v314
        %382 = vmatprep.subr.mxu0 0.0
        %383 = vmatpush1.msra.mxu0 %v313
        %384 = vmatprep.subr.mxu0 0.0
        %385 = vmatpush2.msra.mxu0 0.0
        %386 = vmatprep.subr.mxu0 0.0
        %387 = vmatpush2.msra.mxu0 0.0
        %388 = vmatprep.subr.mxu0 0.0
        %389 = vmatpush2.msra.mxu0 0.0
        %390 = vmatprep.subr.mxu0 0.0
        %391 = vmatpush2.msra.mxu0 0.0
        %392 = vmatprep.subr.mxu0 0.0
        %393 = vmatpush2.msra.mxu0 0.0
        %394 = vmatprep.subr.mxu0 0.0
        %395 = vmatpush2.msra.mxu0 0.0
        %396 = vmatprep.subr.mxu0 0.0
        %397 = vmatpush2.msra.mxu0 0.0
        %398 = vmatprep.subr.mxu0 0.0
        %399 = vmatpush2.msra.mxu0 0.0
        %400 = vmatprep.subr.mxu0 0.0
        %401 = vmatpush2.msra.mxu0 0.0
        %402 = vmatprep.subr.mxu0 0.0
        %403 = vmatpush2.msra.mxu0 0.0
        %404 = vmatprep.subr.mxu0 0.0
        %405 = vmatpush2.msra.mxu0 0.0
        %406 = vmatprep.subr.mxu0 0.0
        %407 = vmatpush2.msra.mxu0 0.0
        %408 = vmatprep.subr.mxu0 0.0
        %409 = vmatpush2.msra.mxu0 0.0
        %410 = vmatprep.subr.mxu0 0.0
        %411 = vmatpush2.msra.mxu0 0.0
        %412 = vmatprep.subr.mxu0 0.0
        %413 = vmatpush2.msra.mxu0 0.0
        %414 = vmatprep.subr.mxu0 0.0
        %415 = vmatpush2.msra.mxu0 0.0
        %416 = vmatprep.mubr.f32.mxu0 0.0
        %417 = vmatmul.mubr.f32.gmra.mxu0 %v330
        %v418 = vpop.f32.mrf.mxu0
        %v419 = vadd.f32 %v350, %v418
        %v420 = vpop.f32.mrf.mxu0
        %421 = vmatprep.mubr.f32.mxu0 0.0
        %422 = vmatmul.mubr.f32.gmra.mxu0 %v331
        %v423 = vpop.f32.mrf.mxu0
        %v424 = vadd.f32 %v350, %v423
        %v425 = vpop.f32.mrf.mxu0
        %426 = vmatprep.mubr.f32.mxu0 0.0
        %427 = vmatmul.mubr.f32.gmra.mxu0 %v332
        %v428 = vpop.f32.mrf.mxu0
        %v429 = vadd.f32 %v350, %v428
        %v430 = vpop.f32.mrf.mxu0
        %431 = vmatprep.mubr.f32.mxu0 0.0
        %432 = vmatmul.mubr.f32.gmra.mxu0 %v333
        %v433 = vpop.f32.mrf.mxu0
        %v434 = vadd.f32 %v350, %v433
        %v435 = vpop.f32.mrf.mxu0
        %436 = vmatprep.mubr.f32.mxu0 0.0
        %437 = vmatmul.mubr.f32.gmra.mxu0 %v334
        %v438 = vpop.f32.mrf.mxu0
        %v439 = vadd.f32 %v350, %v438
        %v440 = vpop.f32.mrf.mxu0
        %441 = vmatprep.mubr.f32.mxu0 0.0
        %442 = vmatmul.mubr.f32.gmra.mxu0 %v335
        %v443 = vpop.f32.mrf.mxu0
        %v444 = vadd.f32 %v350, %v443
        %v445 = vpop.f32.mrf.mxu0
        %446 = vmatprep.mubr.f32.mxu0 0.0
        %447 = vmatmul.mubr.f32.gmra.mxu0 %v336
        %v448 = vpop.f32.mrf.mxu0
        %v449 = vadd.f32 %v350, %v448
        %v450 = vpop.f32.mrf.mxu0
        %451 = vmatprep.mubr.f32.mxu0 0.0
        %452 = vmatmul.mubr.f32.gmra.mxu0 %v337
        %v453 = vpop.f32.mrf.mxu0
        %v454 = vadd.f32 %v350, %v453
        %v455 = vpop.f32.mrf.mxu0
        %456 = vmatprep.mubr.f32.mxu0 0.0
        %457 = vmatmul.mubr.f32.gmra.mxu0 %v338
        %v458 = vpop.f32.mrf.mxu0
        %v459 = vadd.f32 %v350, %v458
        %v460 = vpop.f32.mrf.mxu0
        %461 = vmatprep.mubr.f32.mxu0 0.0
        %462 = vmatmul.mubr.f32.gmra.mxu0 %v339
        %v463 = vpop.f32.mrf.mxu0
        %v464 = vadd.f32 %v350, %v463
        %v465 = vpop.f32.mrf.mxu0
        %466 = vmatprep.mubr.f32.mxu0 0.0
        %467 = vmatmul.mubr.f32.gmra.mxu0 %v340
        %v468 = vpop.f32.mrf.mxu0
        %v469 = vadd.f32 %v350, %v468
        %v470 = vpop.f32.mrf.mxu0
        %471 = vmatprep.mubr.f32.mxu0 0.0
        %472 = vmatmul.mubr.f32.gmra.mxu0 %v341
        %v473 = vpop.f32.mrf.mxu0
        %v474 = vadd.f32 %v350, %v473
        %v475 = vpop.f32.mrf.mxu0
        %476 = vmatprep.mubr.f32.mxu0 0.0
        %477 = vmatmul.mubr.f32.gmra.mxu0 %v342
        %v478 = vpop.f32.mrf.mxu0
        %v479 = vadd.f32 %v350, %v478
        %v480 = vpop.f32.mrf.mxu0
        %481 = vmatprep.mubr.f32.mxu0 0.0
        %482 = vmatmul.mubr.f32.gmra.mxu0 %v343
        %v483 = vpop.f32.mrf.mxu0
        %v484 = vadd.f32 %v350, %v483
        %v485 = vpop.f32.mrf.mxu0
        %486 = vmatprep.mubr.f32.mxu0 0.0
        %487 = vmatmul.mubr.f32.gmra.mxu0 %v344
        %v488 = vpop.f32.mrf.mxu0
        %v489 = vadd.f32 %v350, %v488
        %v490 = vpop.f32.mrf.mxu0
        %491 = vmatprep.mubr.f32.mxu0 0.0
        %492 = vmatmul.mubr.f32.gmra.mxu0 %v345
        %v493 = vpop.f32.mrf.mxu0
        %v494 = vadd.f32 %v350, %v493
        %v495 = vpop.f32.mrf.mxu0
        %496 = vdwg.mxu0
        %v497 = vtanh.pop %v419
        %v498 = vtanh.pop %v424
        %v499 = vtanh.pop %v429
        %v500 = vtanh.pop %v434
        %v501 = vtanh.pop %v439
        %v502 = vtanh.pop %v444
        %v503 = vtanh.pop %v449
        %v504 = vtanh.pop %v454
        %v505 = vtanh.pop %v459
        %v506 = vtanh.pop %v464
        %v507 = vtanh.pop %v469
        %v508 = vtanh.pop %v474
        %v509 = vtanh.pop %v479
        %v510 = vtanh.pop %v484
        %v511 = vtanh.pop %v489
        %v512 = vtanh.pop %v494
        %v513 = vmul.f32 %v497, %v497
        %v514 = vmul.f32 %v498, %v498
        %v515 = vmul.f32 %v499, %v499
        %v516 = vmul.f32 %v500, %v500
        %v517 = vmul.f32 %v501, %v501
        %v518 = vmul.f32 %v502, %v502
        %v519 = vmul.f32 %v503, %v503
        %v520 = vmul.f32 %v504, %v504
        %v521 = vmul.f32 %v505, %v505
        %v522 = vmul.f32 %v506, %v506
        %v523 = vmul.f32 %v507, %v507
        %v524 = vmul.f32 %v508, %v508
        %v525 = vmul.f32 %v509, %v509
        %v526 = vmul.f32 %v510, %v510
        %v527 = vmul.f32 %v511, %v511
        %v528 = vmul.f32 %v512, %v512
        %v529 = vsub.f32 1.0, %v513
        %v530 = vsub.f32 1.0, %v514
        %v531 = vsub.f32 1.0, %v515
        %v532 = vsub.f32 1.0, %v516
        %v533 = vsub.f32 1.0, %v517
        %v534 = vsub.f32 1.0, %v518
        %v535 = vsub.f32 1.0, %v519
        %v536 = vsub.f32 1.0, %v520
        %v537 = vsub.f32 1.0, %v521
        %v538 = vsub.f32 1.0, %v522
        %v539 = vsub.f32 1.0, %v523
        %v540 = vsub.f32 1.0, %v524
        %v541 = vsub.f32 1.0, %v525
        %v542 = vsub.f32 1.0, %v526
        %v543 = vsub.f32 1.0, %v527
        %v544 = vsub.f32 1.0, %v528
        %v545 = vpack.c.bf16 %v314, %v313
        %v546 = vpack.c.bf16 %v316, %v315
        %v547 = vpack.c.bf16 %v318, %v317
        %v548 = vpack.c.bf16 %v320, %v319
        %v549 = vpack.c.bf16 %v322, %v321
        %v550 = vpack.c.bf16 %v324, %v323
        %v551 = vpack.c.bf16 %v326, %v325
        %v552 = vpack.c.bf16 %v328, %v327
        %v553 = vld [vmem:[%s270] sm:$0xff]
        %v554 = vld [vmem:[%s270 + $0x8] sm:$0xff]
        %v555 = vld [vmem:[%s270 + $0x10] sm:$0xff]
        %v556 = vld [vmem:[%s270 + $0x18] sm:$0xff]
        %v557 = vld [vmem:[%s270 + $0x20] sm:$0xff]
        %v558 = vld [vmem:[%s270 + $0x28] sm:$0xff]
        %v559 = vld [vmem:[%s270 + $0x30] sm:$0xff]
        %v560 = vld [vmem:[%s270 + $0x38] sm:$0xff]
        %v561 = vld [vmem:[%s270 + $0x40] sm:$0xff]
        %v562 = vld [vmem:[%s270 + $0x48] sm:$0xff]
        %v563 = vld [vmem:[%s270 + $0x50] sm:$0xff]
        %v564 = vld [vmem:[%s270 + $0x58] sm:$0xff]
        %v565 = vld [vmem:[%s270 + $0x60] sm:$0xff]
        %v566 = vld [vmem:[%s270 + $0x68] sm:$0xff]
        %v567 = vld [vmem:[%s270 + $0x70] sm:$0xff]
        %v568 = vld [vmem:[%s270 + $0x78] sm:$0xff]
        %v569 = vsub.f32 0.0, %v553
        %v570 = vsub.f32 0.0, %v554
        %v571 = vsub.f32 0.0, %v555
        %v572 = vsub.f32 0.0, %v556
        %v573 = vsub.f32 0.0, %v557
        %v574 = vsub.f32 0.0, %v558
        %v575 = vsub.f32 0.0, %v559
        %v576 = vsub.f32 0.0, %v560
        %v577 = vsub.f32 0.0, %v561
        %v578 = vsub.f32 0.0, %v562
        %v579 = vsub.f32 0.0, %v563
        %v580 = vsub.f32 0.0, %v564
        %v581 = vsub.f32 0.0, %v565
        %v582 = vsub.f32 0.0, %v566
        %v583 = vsub.f32 0.0, %v567
        %v584 = vsub.f32 0.0, %v568
        %s585 = sld [smem:[#allocation9]]
        %v586 = vstv %s585
        %v587 = vmul.f32 %v586, %v569
        %v588 = vmul.f32 %v586, %v570
        %v589 = vmul.f32 %v586, %v571
        %v590 = vmul.f32 %v586, %v572
        %v591 = vmul.f32 %v586, %v573
        %v592 = vmul.f32 %v586, %v574
        %v593 = vmul.f32 %v586, %v575
        %v594 = vmul.f32 %v586, %v576
        %v595 = vmul.f32 %v586, %v577
        %v596 = vmul.f32 %v586, %v578
        %v597 = vmul.f32 %v586, %v579
        %v598 = vmul.f32 %v586, %v580
        %v599 = vmul.f32 %v586, %v581
        %v600 = vmul.f32 %v586, %v582
        %v601 = vmul.f32 %v586, %v583
        %v602 = vmul.f32 %v586, %v584
        %v603 = vadd.f32 %v587, 0.0
        %v604 = vadd.f32 %v588, 0.0
        %v605 = vadd.f32 %v589, 0.0
        %v606 = vadd.f32 %v590, 0.0
        %v607 = vadd.f32 %v591, 0.0
        %v608 = vadd.f32 %v592, 0.0
        %v609 = vadd.f32 %v593, 0.0
        %v610 = vadd.f32 %v594, 0.0
        %v611 = vadd.f32 %v595, 0.0
        %v612 = vadd.f32 %v596, 0.0
        %v613 = vadd.f32 %v597, 0.0
        %v614 = vadd.f32 %v598, 0.0
        %v615 = vadd.f32 %v599, 0.0
        %v616 = vadd.f32 %v600, 0.0
        %v617 = vadd.f32 %v601, 0.0
        %v618 = vadd.f32 %v602, 0.0
        %v619 = vpack.c.bf16 %v570, %v569
        %v620 = vpack.c.bf16 %v572, %v571
        %v621 = vpack.c.bf16 %v574, %v573
        %v622 = vpack.c.bf16 %v576, %v575
        %v623 = vpack.c.bf16 %v578, %v577
        %v624 = vpack.c.bf16 %v580, %v579
        %v625 = vpack.c.bf16 %v582, %v581
        %v626 = vpack.c.bf16 %v584, %v583
        %627 = vmatprep.subr.bf16.mxu0 0
        %628 = vmatpush1.bf16.msra.mxu0 %v552
        %629 = vmatprep.subr.bf16.mxu0 0
        %630 = vmatpush1.bf16.msra.mxu0 %v551
        %631 = vmatprep.subr.bf16.mxu0 0
        %632 = vmatpush1.bf16.msra.mxu0 %v550
        %633 = vmatprep.subr.bf16.mxu0 0
        %634 = vmatpush1.bf16.msra.mxu0 %v549
        %635 = vmatprep.subr.bf16.mxu0 0
        %636 = vmatpush1.bf16.msra.mxu0 %v548
        %637 = vmatprep.subr.bf16.mxu0 0
        %638 = vmatpush1.bf16.msra.mxu0 %v547
        %639 = vmatprep.subr.bf16.mxu0 0
        %640 = vmatpush1.bf16.msra.mxu0 %v546
        %641 = vmatprep.subr.bf16.mxu0 0
        %642 = vmatpush1.bf16.msra.mxu0 %v545
        %643 = vmatprep.subr.bf16.mxu0 0
        %644 = vmatpush2.bf16.msra.mxu0 0
        %645 = vmatprep.subr.bf16.mxu0 0
        %646 = vmatpush2.bf16.msra.mxu0 0
        %647 = vmatprep.subr.bf16.mxu0 0
        %648 = vmatpush2.bf16.msra.mxu0 0
        %649 = vmatprep.subr.bf16.mxu0 0
        %650 = vmatpush2.bf16.msra.mxu0 0
        %651 = vmatprep.subr.bf16.mxu0 0
        %652 = vmatpush2.bf16.msra.mxu0 0
        %653 = vmatprep.subr.bf16.mxu0 0
        %654 = vmatpush2.bf16.msra.mxu0 0
        %655 = vmatprep.subr.bf16.mxu0 0
        %656 = vmatpush2.bf16.msra.mxu0 0
        %657 = vmatprep.subr.bf16.mxu0 0
        %658 = vmatpush2.bf16.msra.mxu0 0
        %659 = vmatprep.mubr.bf16.mxu0 0
        %660 = vmatmul.mubr.bf16.gmra.mxu0 %v619
        %v661 = vpop.f32.mrf.mxu0
        %v662 = vadd.f32 0.0, %v661
        %v663 = vpop.f32.mrf.mxu0
        %v664 = vpop.f32.mrf.mxu0
        %v665 = vadd.f32 0.0, %v664
        %v666 = vpop.f32.mrf.mxu0
        %667 = vmatprep.mubr.bf16.mxu0 0
        %668 = vmatmul.mubr.bf16.gmra.mxu0 %v620
        %v669 = vpop.f32.mrf.mxu0
        %v670 = vadd.f32 0.0, %v669
        %v671 = vpop.f32.mrf.mxu0
        %v672 = vpop.f32.mrf.mxu0
        %v673 = vadd.f32 0.0, %v672
        %v674 = vpop.f32.mrf.mxu0
        %675 = vmatprep.mubr.bf16.mxu0 0
        %676 = vmatmul.mubr.bf16.gmra.mxu0 %v621
        %v677 = vpop.f32.mrf.mxu0
        %v678 = vadd.f32 0.0, %v677
        %v679 = vpop.f32.mrf.mxu0
        %v680 = vpop.f32.mrf.mxu0
        %v681 = vadd.f32 0.0, %v680
        %v682 = vpop.f32.mrf.mxu0
        %683 = vmatprep.mubr.bf16.mxu0 0
        %684 = vmatmul.mubr.bf16.gmra.mxu0 %v622
        %v685 = vpop.f32.mrf.mxu0
        %v686 = vadd.f32 0.0, %v685
        %v687 = vpop.f32.mrf.mxu0
        %v688 = vpop.f32.mrf.mxu0
        %v689 = vadd.f32 0.0, %v688
        %v690 = vpop.f32.mrf.mxu0
        %691 = vmatprep.mubr.bf16.mxu0 0
        %692 = vmatmul.mubr.bf16.gmra.mxu0 %v623
        %v693 = vpop.f32.mrf.mxu0
        %v694 = vadd.f32 0.0, %v693
        %v695 = vpop.f32.mrf.mxu0
        %v696 = vpop.f32.mrf.mxu0
        %v697 = vadd.f32 0.0, %v696
        %v698 = vpop.f32.mrf.mxu0
        %699 = vmatprep.mubr.bf16.mxu0 0
        %700 = vmatmul.mubr.bf16.gmra.mxu0 %v624
        %v701 = vpop.f32.mrf.mxu0
        %v702 = vadd.f32 0.0, %v701
        %v703 = vpop.f32.mrf.mxu0
        %v704 = vpop.f32.mrf.mxu0
        %v705 = vadd.f32 0.0, %v704
        %v706 = vpop.f32.mrf.mxu0
        %707 = vmatprep.mubr.bf16.mxu0 0
        %708 = vmatmul.mubr.bf16.gmra.mxu0 %v625
        %v709 = vpop.f32.mrf.mxu0
        %v710 = vadd.f32 0.0, %v709
        %v711 = vpop.f32.mrf.mxu0
        %v712 = vpop.f32.mrf.mxu0
        %v713 = vadd.f32 0.0, %v712
        %v714 = vpop.f32.mrf.mxu0
        %715 = vmatprep.mubr.bf16.mxu0 0
        %716 = vmatmul.mubr.bf16.gmra.mxu0 %v626
        %v717 = vpop.f32.mrf.mxu0
        %v718 = vadd.f32 0.0, %v717
        %v719 = vpop.f32.mrf.mxu0
        %v720 = vpop.f32.mrf.mxu0
        %v721 = vadd.f32 0.0, %v720
        %v722 = vpop.f32.mrf.mxu0
        %723 = vdwg.mxu0
        %v724 = vmul.f32 %v529, %v662
        %v725 = vmul.f32 %v530, %v665
        %v726 = vmul.f32 %v531, %v670
        %v727 = vmul.f32 %v532, %v673
        %v728 = vmul.f32 %v533, %v678
        %v729 = vmul.f32 %v534, %v681
        %v730 = vmul.f32 %v535, %v686
        %v731 = vmul.f32 %v536, %v689
        %v732 = vmul.f32 %v537, %v694
        %v733 = vmul.f32 %v538, %v697
        %v734 = vmul.f32 %v539, %v702
        %v735 = vmul.f32 %v540, %v705
        %v736 = vmul.f32 %v541, %v710
        %v737 = vmul.f32 %v542, %v713
        %v738 = vmul.f32 %v543, %v718
        %v739 = vmul.f32 %v544, %v721
        %v740 = vsub.f32 %v724, %v569
        %v741 = vsub.f32 %v725, %v570
        %v742 = vsub.f32 %v726, %v571
        %v743 = vsub.f32 %v727, %v572
        %v744 = vsub.f32 %v728, %v573
        %v745 = vsub.f32 %v729, %v574
        %v746 = vsub.f32 %v730, %v575
        %v747 = vsub.f32 %v731, %v576
        %v748 = vsub.f32 %v732, %v577
        %v749 = vsub.f32 %v733, %v578
        %v750 = vsub.f32 %v734, %v579
        %v751 = vsub.f32 %v735, %v580
        %v752 = vsub.f32 %v736, %v581
        %v753 = vsub.f32 %v737, %v582
        %v754 = vsub.f32 %v738, %v583
        %v755 = vsub.f32 %v739, %v584
        %s756 = sld [smem:[#allocation9 + $0x1]]
        %v757 = vstv %s756
        %v758 = vmul.f32 %v757, %v740
        %v759 = vmul.f32 %v757, %v741
        %v760 = vmul.f32 %v757, %v742
        %v761 = vmul.f32 %v757, %v743
        %v762 = vmul.f32 %v757, %v744
        %v763 = vmul.f32 %v757, %v745
        %v764 = vmul.f32 %v757, %v746
        %v765 = vmul.f32 %v757, %v747
        %v766 = vmul.f32 %v757, %v748
        %v767 = vmul.f32 %v757, %v749
        %v768 = vmul.f32 %v757, %v750
        %v769 = vmul.f32 %v757, %v751
        %v770 = vmul.f32 %v757, %v752
        %v771 = vmul.f32 %v757, %v753
        %v772 = vmul.f32 %v757, %v754
        %v773 = vmul.f32 %v757, %v755
        %v774 = vadd.f32 %v603, %v758
        %v775 = vadd.f32 %v604, %v759
        %v776 = vadd.f32 %v605, %v760
        %v777 = vadd.f32 %v606, %v761
        %v778 = vadd.f32 %v607, %v762
        %v779 = vadd.f32 %v608, %v763
        %v780 = vadd.f32 %v609, %v764
        %v781 = vadd.f32 %v610, %v765
        %v782 = vadd.f32 %v611, %v766
        %v783 = vadd.f32 %v612, %v767
        %v784 = vadd.f32 %v613, %v768
        %v785 = vadd.f32 %v614, %v769
        %v786 = vadd.f32 %v615, %v770
        %v787 = vadd.f32 %v616, %v771
        %v788 = vadd.f32 %v617, %v772
        %v789 = vadd.f32 %v618, %v773
        %v790 = vpack.c.bf16 %v741, %v740
        %v791 = vpack.c.bf16 %v743, %v742
        %v792 = vpack.c.bf16 %v745, %v744
        %v793 = vpack.c.bf16 %v747, %v746
        %v794 = vpack.c.bf16 %v749, %v748
        %v795 = vpack.c.bf16 %v751, %v750
        %v796 = vpack.c.bf16 %v753, %v752
        %v797 = vpack.c.bf16 %v755, %v754
        %798 = vmatprep.subr.bf16.mxu0 0
        %799 = vmatpush1.bf16.msra.mxu0 %v552
        %800 = vmatprep.subr.bf16.mxu0 0
        %801 = vmatpush1.bf16.msra.mxu0 %v551
        %802 = vmatprep.subr.bf16.mxu0 0
        %803 = vmatpush1.bf16.msra.mxu0 %v550
        %804 = vmatprep.subr.bf16.mxu0 0
        %805 = vmatpush1.bf16.msra.mxu0 %v549
        %806 = vmatprep.subr.bf16.mxu0 0
        %807 = vmatpush1.bf16.msra.mxu0 %v548
        %808 = vmatprep.subr.bf16.mxu0 0
        %809 = vmatpush1.bf16.msra.mxu0 %v547
        %810 = vmatprep.subr.bf16.mxu0 0
        %811 = vmatpush1.bf16.msra.mxu0 %v546
        %812 = vmatprep.subr.bf16.mxu0 0
        %813 = vmatpush1.bf16.msra.mxu0 %v545
        %814 = vmatprep.subr.bf16.mxu0 0
        %815 = vmatpush2.bf16.msra.mxu0 0
        %816 = vmatprep.subr.bf16.mxu0 0
        %817 = vmatpush2.bf16.msra.mxu0 0
        %818 = vmatprep.subr.bf16.mxu0 0
        %819 = vmatpush2.bf16.msra.mxu0 0
        %820 = vmatprep.subr.bf16.mxu0 0
        %821 = vmatpush2.bf16.msra.mxu0 0
        %822 = vmatprep.subr.bf16.mxu0 0
        %823 = vmatpush2.bf16.msra.mxu0 0
        %824 = vmatprep.subr.bf16.mxu0 0
        %825 = vmatpush2.bf16.msra.mxu0 0
        %826 = vmatprep.subr.bf16.mxu0 0
        %827 = vmatpush2.bf16.msra.mxu0 0
        %828 = vmatprep.subr.bf16.mxu0 0
        %829 = vmatpush2.bf16.msra.mxu0 0
        %830 = vmatprep.mubr.bf16.mxu0 0
        %831 = vmatmul.mubr.bf16.gmra.mxu0 %v790
        %v832 = vpop.f32.mrf.mxu0
        %v833 = vadd.f32 0.0, %v832
        %v834 = vpop.f32.mrf.mxu0
        %v835 = vpop.f32.mrf.mxu0
        %v836 = vadd.f32 0.0, %v835
        %v837 = vpop.f32.mrf.mxu0
        %838 = vmatprep.mubr.bf16.mxu0 0
        %839 = vmatmul.mubr.bf16.gmra.mxu0 %v791
        %v840 = vpop.f32.mrf.mxu0
        %v841 = vadd.f32 0.0, %v840
        %v842 = vpop.f32.mrf.mxu0
        %v843 = vpop.f32.mrf.mxu0
        %v844 = vadd.f32 0.0, %v843
        %v845 = vpop.f32.mrf.mxu0
        %846 = vmatprep.mubr.bf16.mxu0 0
        %847 = vmatmul.mubr.bf16.gmra.mxu0 %v792
        %v848 = vpop.f32.mrf.mxu0
        %v849 = vadd.f32 0.0, %v848
        %v850 = vpop.f32.mrf.mxu0
        %v851 = vpop.f32.mrf.mxu0
        %v852 = vadd.f32 0.0, %v851
        %v853 = vpop.f32.mrf.mxu0
        %854 = vmatprep.mubr.bf16.mxu0 0
        %855 = vmatmul.mubr.bf16.gmra.mxu0 %v793
        %v856 = vpop.f32.mrf.mxu0
        %v857 = vadd.f32 0.0, %v856
        %v858 = vpop.f32.mrf.mxu0
        %v859 = vpop.f32.mrf.mxu0
        %v860 = vadd.f32 0.0, %v859
        %v861 = vpop.f32.mrf.mxu0
        %862 = vmatprep.mubr.bf16.mxu0 0
        %863 = vmatmul.mubr.bf16.gmra.mxu0 %v794
        %v864 = vpop.f32.mrf.mxu0
        %v865 = vadd.f32 0.0, %v864
        %v866 = vpop.f32.mrf.mxu0
        %v867 = vpop.f32.mrf.mxu0
        %v868 = vadd.f32 0.0, %v867
        %v869 = vpop.f32.mrf.mxu0
        %870 = vmatprep.mubr.bf16.mxu0 0
        %871 = vmatmul.mubr.bf16.gmra.mxu0 %v795
        %v872 = vpop.f32.mrf.mxu0
        %v873 = vadd.f32 0.0, %v872
        %v874 = vpop.f32.mrf.mxu0
        %v875 = vpop.f32.mrf.mxu0
        %v876 = vadd.f32 0.0, %v875
        %v877 = vpop.f32.mrf.mxu0
        %878 = vmatprep.mubr.bf16.mxu0 0
        %879 = vmatmul.mubr.bf16.gmra.mxu0 %v796
        %v880 = vpop.f32.mrf.mxu0
        %v881 = vadd.f32 0.0, %v880
        %v882 = vpop.f32.mrf.mxu0
        %v883 = vpop.f32.mrf.mxu0
        %v884 = vadd.f32 0.0, %v883
        %v885 = vpop.f32.mrf.mxu0
        %886 = vmatprep.mubr.bf16.mxu0 0
        %887 = vmatmul.mubr.bf16.gmra.mxu0 %v797
        %v888 = vpop.f32.mrf.mxu0
        %v889 = vadd.f32 0.0, %v888
        %v890 = vpop.f32.mrf.mxu0
        %v891 = vpop.f32.mrf.mxu0
        %v892 = vadd.f32 0.0, %v891
        %v893 = vpop.f32.mrf.mxu0
        %894 = vdwg.mxu0
        %v895 = vmul.f32 %v529, %v833
        %v896 = vmul.f32 %v530, %v836
        %v897 = vmul.f32 %v531, %v841
        %v898 = vmul.f32 %v532, %v844
        %v899 = vmul.f32 %v533, %v849
        %v900 = vmul.f32 %v534, %v852
        %v901 = vmul.f32 %v535, %v857
        %v902 = vmul.f32 %v536, %v860
        %v903 = vmul.f32 %v537, %v865
        %v904 = vmul.f32 %v538, %v868
        %v905 = vmul.f32 %v539, %v873
        %v906 = vmul.f32 %v540, %v876
        %v907 = vmul.f32 %v541, %v881
        %v908 = vmul.f32 %v542, %v884
        %v909 = vmul.f32 %v543, %v889
        %v910 = vmul.f32 %v544, %v892
        %v911 = vsub.f32 %v895, %v740
        %v912 = vsub.f32 %v896, %v741
        %v913 = vsub.f32 %v897, %v742
        %v914 = vsub.f32 %v898, %v743
        %v915 = vsub.f32 %v899, %v744
        %v916 = vsub.f32 %v900, %v745
        %v917 = vsub.f32 %v901, %v746
        %v918 = vsub.f32 %v902, %v747
        %v919 = vsub.f32 %v903, %v748
        %v920 = vsub.f32 %v904, %v749
        %v921 = vsub.f32 %v905, %v750
        %v922 = vsub.f32 %v906, %v751
        %v923 = vsub.f32 %v907, %v752
        %v924 = vsub.f32 %v908, %v753
        %v925 = vsub.f32 %v909, %v754
        %v926 = vsub.f32 %v910, %v755
        %s927 = sld [smem:[#allocation9 + $0x2]]
        %v928 = vstv %s927
        %v929 = vmul.f32 %v928, %v911
        %v930 = vmul.f32 %v928, %v912
        %v931 = vmul.f32 %v928, %v913
        %v932 = vmul.f32 %v928, %v914
        %v933 = vmul.f32 %v928, %v915
        %v934 = vmul.f32 %v928, %v916
        %v935 = vmul.f32 %v928, %v917
        %v936 = vmul.f32 %v928, %v918
        %v937 = vmul.f32 %v928, %v919
        %v938 = vmul.f32 %v928, %v920
        %v939 = vmul.f32 %v928, %v921
        %v940 = vmul.f32 %v928, %v922
        %v941 = vmul.f32 %v928, %v923
        %v942 = vmul.f32 %v928, %v924
        %v943 = vmul.f32 %v928, %v925
        %v944 = vmul.f32 %v928, %v926
        %v945 = vadd.f32 %v774, %v929
        %v946 = vadd.f32 %v775, %v930
        %v947 = vadd.f32 %v776, %v931
        %v948 = vadd.f32 %v777, %v932
        %v949 = vadd.f32 %v778, %v933
        %v950 = vadd.f32 %v779, %v934
        %v951 = vadd.f32 %v780, %v935
        %v952 = vadd.f32 %v781, %v936
        %v953 = vadd.f32 %v782, %v937
        %v954 = vadd.f32 %v783, %v938
        %v955 = vadd.f32 %v784, %v939
        %v956 = vadd.f32 %v785, %v940
        %v957 = vadd.f32 %v786, %v941
        %v958 = vadd.f32 %v787, %v942
        %v959 = vadd.f32 %v788, %v943
        %v960 = vadd.f32 %v789, %v944
        %v961 = vpack.c.bf16 %v912, %v911
        %v962 = vpack.c.bf16 %v914, %v913
        %v963 = vpack.c.bf16 %v916, %v915
        %v964 = vpack.c.bf16 %v918, %v917
        %v965 = vpack.c.bf16 %v920, %v919
        %v966 = vpack.c.bf16 %v922, %v921
        %v967 = vpack.c.bf16 %v924, %v923
        %v968 = vpack.c.bf16 %v926, %v925
        %969 = vmatprep.subr.bf16.mxu0 0
        %970 = vmatpush1.bf16.msra.mxu0 %v552
        %971 = vmatprep.subr.bf16.mxu0 0
        %972 = vmatpush1.bf16.msra.mxu0 %v551
        %973 = vmatprep.subr.bf16.mxu0 0
        %974 = vmatpush1.bf16.msra.mxu0 %v550
        %975 = vmatprep.subr.bf16.mxu0 0
        %976 = vmatpush1.bf16.msra.mxu0 %v549
        %977 = vmatprep.subr.bf16.mxu0 0
        %978 = vmatpush1.bf16.msra.mxu0 %v548
        %979 = vmatprep.subr.bf16.mxu0 0
        %980 = vmatpush1.bf16.msra.mxu0 %v547
        %981 = vmatprep.subr.bf16.mxu0 0
        %982 = vmatpush1.bf16.msra.mxu0 %v546
        %983 = vmatprep.subr.bf16.mxu0 0
        %984 = vmatpush1.bf16.msra.mxu0 %v545
        %985 = vmatprep.subr.bf16.mxu0 0
        %986 = vmatpush2.bf16.msra.mxu0 0
        %987 = vmatprep.subr.bf16.mxu0 0
        %988 = vmatpush2.bf16.msra.mxu0 0
        %989 = vmatprep.subr.bf16.mxu0 0
        %990 = vmatpush2.bf16.msra.mxu0 0
        %991 = vmatprep.subr.bf16.mxu0 0
        %992 = vmatpush2.bf16.msra.mxu0 0
        %993 = vmatprep.subr.bf16.mxu0 0
        %994 = vmatpush2.bf16.msra.mxu0 0
        %995 = vmatprep.subr.bf16.mxu0 0
        %996 = vmatpush2.bf16.msra.mxu0 0
        %997 = vmatprep.subr.bf16.mxu0 0
        %998 = vmatpush2.bf16.msra.mxu0 0
        %999 = vmatprep.subr.bf16.mxu0 0
        %1000 = vmatpush2.bf16.msra.mxu0 0
        %1001 = vmatprep.mubr.bf16.mxu0 0
        %1002 = vmatmul.mubr.bf16.gmra.mxu0 %v961
        %v1003 = vpop.f32.mrf.mxu0
        %v1004 = vadd.f32 0.0, %v1003
        %v1005 = vpop.f32.mrf.mxu0
        %v1006 = vpop.f32.mrf.mxu0
        %v1007 = vadd.f32 0.0, %v1006
        %v1008 = vpop.f32.mrf.mxu0
        %1009 = vmatprep.mubr.bf16.mxu0 0
        %1010 = vmatmul.mubr.bf16.gmra.mxu0 %v962
        %v1011 = vpop.f32.mrf.mxu0
        %v1012 = vadd.f32 0.0, %v1011
        %v1013 = vpop.f32.mrf.mxu0
        %v1014 = vpop.f32.mrf.mxu0
        %v1015 = vadd.f32 0.0, %v1014
        %v1016 = vpop.f32.mrf.mxu0
        %1017 = vmatprep.mubr.bf16.mxu0 0
        %1018 = vmatmul.mubr.bf16.gmra.mxu0 %v963
        %v1019 = vpop.f32.mrf.mxu0
        %v1020 = vadd.f32 0.0, %v1019
        %v1021 = vpop.f32.mrf.mxu0
        %v1022 = vpop.f32.mrf.mxu0
        %v1023 = vadd.f32 0.0, %v1022
        %v1024 = vpop.f32.mrf.mxu0
        %1025 = vmatprep.mubr.bf16.mxu0 0
        %1026 = vmatmul.mubr.bf16.gmra.mxu0 %v964
        %v1027 = vpop.f32.mrf.mxu0
        %v1028 = vadd.f32 0.0, %v1027
        %v1029 = vpop.f32.mrf.mxu0
        %v1030 = vpop.f32.mrf.mxu0
        %v1031 = vadd.f32 0.0, %v1030
        %v1032 = vpop.f32.mrf.mxu0
        %1033 = vmatprep.mubr.bf16.mxu0 0
        %1034 = vmatmul.mubr.bf16.gmra.mxu0 %v965
        %v1035 = vpop.f32.mrf.mxu0
        %v1036 = vadd.f32 0.0, %v1035
        %v1037 = vpop.f32.mrf.mxu0
        %v1038 = vpop.f32.mrf.mxu0
        %v1039 = vadd.f32 0.0, %v1038
        %v1040 = vpop.f32.mrf.mxu0
        %1041 = vmatprep.mubr.bf16.mxu0 0
        %1042 = vmatmul.mubr.bf16.gmra.mxu0 %v966
        %v1043 = vpop.f32.mrf.mxu0
        %v1044 = vadd.f32 0.0, %v1043
        %v1045 = vpop.f32.mrf.mxu0
        %v1046 = vpop.f32.mrf.mxu0
        %v1047 = vadd.f32 0.0, %v1046
        %v1048 = vpop.f32.mrf.mxu0
        %1049 = vmatprep.mubr.bf16.mxu0 0
        %1050 = vmatmul.mubr.bf16.gmra.mxu0 %v967
        %v1051 = vpop.f32.mrf.mxu0
        %v1052 = vadd.f32 0.0, %v1051
        %v1053 = vpop.f32.mrf.mxu0
        %v1054 = vpop.f32.mrf.mxu0
        %v1055 = vadd.f32 0.0, %v1054
        %v1056 = vpop.f32.mrf.mxu0
        %1057 = vmatprep.mubr.bf16.mxu0 0
        %1058 = vmatmul.mubr.bf16.gmra.mxu0 %v968
        %v1059 = vpop.f32.mrf.mxu0
        %v1060 = vadd.f32 0.0, %v1059
        %v1061 = vpop.f32.mrf.mxu0
        %v1062 = vpop.f32.mrf.mxu0
        %v1063 = vadd.f32 0.0, %v1062
        %v1064 = vpop.f32.mrf.mxu0
        %1065 = vdwg.mxu0
        %v1066 = vmul.f32 %v529, %v1004
        %v1067 = vmul.f32 %v530, %v1007
        %v1068 = vmul.f32 %v531, %v1012
        %v1069 = vmul.f32 %v532, %v1015
        %v1070 = vmul.f32 %v533, %v1020
        %v1071 = vmul.f32 %v534, %v1023
        %v1072 = vmul.f32 %v535, %v1028
        %v1073 = vmul.f32 %v536, %v1031
        %v1074 = vmul.f32 %v537, %v1036
        %v1075 = vmul.f32 %v538, %v1039
        %v1076 = vmul.f32 %v539, %v1044
        %v1077 = vmul.f32 %v540, %v1047
        %v1078 = vmul.f32 %v541, %v1052
        %v1079 = vmul.f32 %v542, %v1055
        %v1080 = vmul.f32 %v543, %v1060
        %v1081 = vmul.f32 %v544, %v1063
        %v1082 = vsub.f32 %v1066, %v911
        %v1083 = vsub.f32 %v1067, %v912
        %v1084 = vsub.f32 %v1068, %v913
        %v1085 = vsub.f32 %v1069, %v914
        %v1086 = vsub.f32 %v1070, %v915
        %v1087 = vsub.f32 %v1071, %v916
        %v1088 = vsub.f32 %v1072, %v917
        %v1089 = vsub.f32 %v1073, %v918
        %v1090 = vsub.f32 %v1074, %v919
        %v1091 = vsub.f32 %v1075, %v920
        %v1092 = vsub.f32 %v1076, %v921
        %v1093 = vsub.f32 %v1077, %v922
        %v1094 = vsub.f32 %v1078, %v923
        %v1095 = vsub.f32 %v1079, %v924
        %v1096 = vsub.f32 %v1080, %v925
        %v1097 = vsub.f32 %v1081, %v926
        %s1098 = sld [smem:[#allocation9 + $0x3]]
        %v1099 = vstv %s1098
        %v1100 = vmul.f32 %v1099, %v1082
        %v1101 = vmul.f32 %v1099, %v1083
        %v1102 = vmul.f32 %v1099, %v1084
        %v1103 = vmul.f32 %v1099, %v1085
        %v1104 = vmul.f32 %v1099, %v1086
        %v1105 = vmul.f32 %v1099, %v1087
        %v1106 = vmul.f32 %v1099, %v1088
        %v1107 = vmul.f32 %v1099, %v1089
        %v1108 = vmul.f32 %v1099, %v1090
        %v1109 = vmul.f32 %v1099, %v1091
        %v1110 = vmul.f32 %v1099, %v1092
        %v1111 = vmul.f32 %v1099, %v1093
        %v1112 = vmul.f32 %v1099, %v1094
        %v1113 = vmul.f32 %v1099, %v1095
        %v1114 = vmul.f32 %v1099, %v1096
        %v1115 = vmul.f32 %v1099, %v1097
        %v1116 = vadd.f32 %v945, %v1100
        %v1117 = vadd.f32 %v946, %v1101
        %v1118 = vadd.f32 %v947, %v1102
        %v1119 = vadd.f32 %v948, %v1103
        %v1120 = vadd.f32 %v949, %v1104
        %v1121 = vadd.f32 %v950, %v1105
        %v1122 = vadd.f32 %v951, %v1106
        %v1123 = vadd.f32 %v952, %v1107
        %v1124 = vadd.f32 %v953, %v1108
        %v1125 = vadd.f32 %v954, %v1109
        %v1126 = vadd.f32 %v955, %v1110
        %v1127 = vadd.f32 %v956, %v1111
        %v1128 = vadd.f32 %v957, %v1112
        %v1129 = vadd.f32 %v958, %v1113
        %v1130 = vadd.f32 %v959, %v1114
        %v1131 = vadd.f32 %v960, %v1115
        %v1132 = vpack.c.bf16 %v1117, %v1116
        %v1133 = vpack.c.bf16 %v1119, %v1118
        %v1134 = vpack.c.bf16 %v1121, %v1120
        %v1135 = vpack.c.bf16 %v1123, %v1122
        %v1136 = vpack.c.bf16 %v1125, %v1124
        %v1137 = vpack.c.bf16 %v1127, %v1126
        %v1138 = vpack.c.bf16 %v1129, %v1128
        %v1139 = vpack.c.bf16 %v1131, %v1130
        %1140 = vmatprep.subr.bf16.mxu0 0
        %1141 = vmatpush1.bf16.msra.mxu0 %v552
        %1142 = vmatprep.subr.bf16.mxu0 0
        %1143 = vmatpush1.bf16.msra.mxu0 %v551
        %1144 = vmatprep.subr.bf16.mxu0 0
        %1145 = vmatpush1.bf16.msra.mxu0 %v550
        %1146 = vmatprep.subr.bf16.mxu0 0
        %1147 = vmatpush1.bf16.msra.mxu0 %v549
        %1148 = vmatprep.subr.bf16.mxu0 0
        %1149 = vmatpush1.bf16.msra.mxu0 %v548
        %1150 = vmatprep.subr.bf16.mxu0 0
        %1151 = vmatpush1.bf16.msra.mxu0 %v547
        %1152 = vmatprep.subr.bf16.mxu0 0
        %1153 = vmatpush1.bf16.msra.mxu0 %v546
        %1154 = vmatprep.subr.bf16.mxu0 0
        %1155 = vmatpush1.bf16.msra.mxu0 %v545
        %1156 = vmatprep.subr.bf16.mxu0 0
        %1157 = vmatpush2.bf16.msra.mxu0 0
        %1158 = vmatprep.subr.bf16.mxu0 0
        %1159 = vmatpush2.bf16.msra.mxu0 0
        %1160 = vmatprep.subr.bf16.mxu0 0
        %1161 = vmatpush2.bf16.msra.mxu0 0
        %1162 = vmatprep.subr.bf16.mxu0 0
        %1163 = vmatpush2.bf16.msra.mxu0 0
        %1164 = vmatprep.subr.bf16.mxu0 0
        %1165 = vmatpush2.bf16.msra.mxu0 0
        %1166 = vmatprep.subr.bf16.mxu0 0
        %1167 = vmatpush2.bf16.msra.mxu0 0
        %1168 = vmatprep.subr.bf16.mxu0 0
        %1169 = vmatpush2.bf16.msra.mxu0 0
        %1170 = vmatprep.subr.bf16.mxu0 0
        %1171 = vmatpush2.bf16.msra.mxu0 0
        %1172 = vmatprep.mubr.bf16.mxu0 0
        %1173 = vmatmul.mubr.bf16.gmra.mxu0 %v1132
        %v1174 = vpop.f32.mrf.mxu0
        %v1175 = vadd.f32 0.0, %v1174
        %v1176 = vpop.f32.mrf.mxu0
        %v1177 = vpop.f32.mrf.mxu0
        %v1178 = vadd.f32 0.0, %v1177
        %v1179 = vpop.f32.mrf.mxu0
        %1180 = vmatprep.mubr.bf16.mxu0 0
        %1181 = vmatmul.mubr.bf16.gmra.mxu0 %v1133
        %v1182 = vpop.f32.mrf.mxu0
        %v1183 = vadd.f32 0.0, %v1182
        %v1184 = vpop.f32.mrf.mxu0
        %v1185 = vpop.f32.mrf.mxu0
        %v1186 = vadd.f32 0.0, %v1185
        %v1187 = vpop.f32.mrf.mxu0
        %1188 = vmatprep.mubr.bf16.mxu0 0
        %1189 = vmatmul.mubr.bf16.gmra.mxu0 %v1134
        %v1190 = vpop.f32.mrf.mxu0
        %v1191 = vadd.f32 0.0, %v1190
        %v1192 = vpop.f32.mrf.mxu0
        %v1193 = vpop.f32.mrf.mxu0
        %v1194 = vadd.f32 0.0, %v1193
        %v1195 = vpop.f32.mrf.mxu0
        %1196 = vmatprep.mubr.bf16.mxu0 0
        %1197 = vmatmul.mubr.bf16.gmra.mxu0 %v1135
        %v1198 = vpop.f32.mrf.mxu0
        %v1199 = vadd.f32 0.0, %v1198
        %v1200 = vpop.f32.mrf.mxu0
        %v1201 = vpop.f32.mrf.mxu0
        %v1202 = vadd.f32 0.0, %v1201
        %v1203 = vpop.f32.mrf.mxu0
        %1204 = vmatprep.mubr.bf16.mxu0 0
        %1205 = vmatmul.mubr.bf16.gmra.mxu0 %v1136
        %v1206 = vpop.f32.mrf.mxu0
        %v1207 = vadd.f32 0.0, %v1206
        %v1208 = vpop.f32.mrf.mxu0
        %v1209 = vpop.f32.mrf.mxu0
        %v1210 = vadd.f32 0.0, %v1209
        %v1211 = vpop.f32.mrf.mxu0
        %1212 = vmatprep.mubr.bf16.mxu0 0
        %1213 = vmatmul.mubr.bf16.gmra.mxu0 %v1137
        %v1214 = vpop.f32.mrf.mxu0
        %v1215 = vadd.f32 0.0, %v1214
        %v1216 = vpop.f32.mrf.mxu0
        %v1217 = vpop.f32.mrf.mxu0
        %v1218 = vadd.f32 0.0, %v1217
        %v1219 = vpop.f32.mrf.mxu0
        %1220 = vmatprep.mubr.bf16.mxu0 0
        %1221 = vmatmul.mubr.bf16.gmra.mxu0 %v1138
        %v1222 = vpop.f32.mrf.mxu0
        %v1223 = vadd.f32 0.0, %v1222
        %v1224 = vpop.f32.mrf.mxu0
        %v1225 = vpop.f32.mrf.mxu0
        %v1226 = vadd.f32 0.0, %v1225
        %v1227 = vpop.f32.mrf.mxu0
        %1228 = vmatprep.mubr.bf16.mxu0 0
        %1229 = vmatmul.mubr.bf16.gmra.mxu0 %v1139
        %v1230 = vpop.f32.mrf.mxu0
        %v1231 = vadd.f32 0.0, %v1230
        %v1232 = vpop.f32.mrf.mxu0
        %v1233 = vpop.f32.mrf.mxu0
        %v1234 = vadd.f32 0.0, %v1233
        %v1235 = vpop.f32.mrf.mxu0
        %1236 = vdwg.mxu0
        %v1237 = vmul.f32 %v529, %v1175
        %v1238 = vmul.f32 %v530, %v1178
        %v1239 = vmul.f32 %v531, %v1183
        %v1240 = vmul.f32 %v532, %v1186
        %v1241 = vmul.f32 %v533, %v1191
        %v1242 = vmul.f32 %v534, %v1194
        %v1243 = vmul.f32 %v535, %v1199
        %v1244 = vmul.f32 %v536, %v1202
        %v1245 = vmul.f32 %v537, %v1207
        %v1246 = vmul.f32 %v538, %v1210
        %v1247 = vmul.f32 %v539, %v1215
        %v1248 = vmul.f32 %v540, %v1218
        %v1249 = vmul.f32 %v541, %v1223
        %v1250 = vmul.f32 %v542, %v1226
        %v1251 = vmul.f32 %v543, %v1231
        %v1252 = vmul.f32 %v544, %v1234
        %v1253 = vsub.f32 %v1237, %v1116
        %v1254 = vsub.f32 %v1238, %v1117
        %v1255 = vsub.f32 %v1239, %v1118
        %v1256 = vsub.f32 %v1240, %v1119
        %v1257 = vsub.f32 %v1241, %v1120
        %v1258 = vsub.f32 %v1242, %v1121
        %v1259 = vsub.f32 %v1243, %v1122
        %v1260 = vsub.f32 %v1244, %v1123
        %v1261 = vsub.f32 %v1245, %v1124
        %v1262 = vsub.f32 %v1246, %v1125
        %v1263 = vsub.f32 %v1247, %v1126
        %v1264 = vsub.f32 %v1248, %v1127
        %v1265 = vsub.f32 %v1249, %v1128
        %v1266 = vsub.f32 %v1250, %v1129
        %v1267 = vsub.f32 %v1251, %v1130
        %v1268 = vsub.f32 %v1252, %v1131
        %v1269 = vsub.f32 %v1253, %v553
        %v1270 = vsub.f32 %v1254, %v554
        %v1271 = vsub.f32 %v1255, %v555
        %v1272 = vsub.f32 %v1256, %v556
        %v1273 = vsub.f32 %v1257, %v557
        %v1274 = vsub.f32 %v1258, %v558
        %v1275 = vsub.f32 %v1259, %v559
        %v1276 = vsub.f32 %v1260, %v560
        %v1277 = vsub.f32 %v1261, %v561
        %v1278 = vsub.f32 %v1262, %v562
        %v1279 = vsub.f32 %v1263, %v563
        %v1280 = vsub.f32 %v1264, %v564
        %v1281 = vsub.f32 %v1265, %v565
        %v1282 = vsub.f32 %v1266, %v566
        %v1283 = vsub.f32 %v1267, %v567
        %v1284 = vsub.f32 %v1268, %v568
        %v1285 = vmul.f32 %v1269, %v1269
        %v1286 = vmul.f32 %v1270, %v1270
        %v1287 = vmul.f32 %v1271, %v1271
        %v1288 = vmul.f32 %v1272, %v1272
        %v1289 = vmul.f32 %v1273, %v1273
        %v1290 = vmul.f32 %v1274, %v1274
        %v1291 = vmul.f32 %v1275, %v1275
        %v1292 = vmul.f32 %v1276, %v1276
        %v1293 = vmul.f32 %v1277, %v1277
        %v1294 = vmul.f32 %v1278, %v1278
        %v1295 = vmul.f32 %v1279, %v1279
        %v1296 = vmul.f32 %v1280, %v1280
        %v1297 = vmul.f32 %v1281, %v1281
        %v1298 = vmul.f32 %v1282, %v1282
        %v1299 = vmul.f32 %v1283, %v1283
        %v1300 = vmul.f32 %v1284, %v1284
        %v1301 = vadd.f32 %v1285, 0.0
        %v1302 = vadd.f32 %v1286, 0.0
        %v1303 = vadd.f32 %v1287, 0.0
        %v1304 = vadd.f32 %v1288, 0.0
        %v1305 = vadd.f32 %v1289, 0.0
        %v1306 = vadd.f32 %v1290, 0.0
        %v1307 = vadd.f32 %v1291, 0.0
        %v1308 = vadd.f32 %v1292, 0.0
        %v1309 = vadd.f32 %v1293, 0.0
        %v1310 = vadd.f32 %v1294, 0.0
        %v1311 = vadd.f32 %v1295, 0.0
        %v1312 = vadd.f32 %v1296, 0.0
        %v1313 = vadd.f32 %v1297, 0.0
        %v1314 = vadd.f32 %v1298, 0.0
        %v1315 = vadd.f32 %v1299, 0.0
        %v1316 = vadd.f32 %v1300, 0.0
        %v1317 = vmul.f32 %v586, %v1269
        %v1318 = vmul.f32 %v586, %v1270
        %v1319 = vmul.f32 %v586, %v1271
        %v1320 = vmul.f32 %v586, %v1272
        %v1321 = vmul.f32 %v586, %v1273
        %v1322 = vmul.f32 %v586, %v1274
        %v1323 = vmul.f32 %v586, %v1275
        %v1324 = vmul.f32 %v586, %v1276
        %v1325 = vmul.f32 %v586, %v1277
        %v1326 = vmul.f32 %v586, %v1278
        %v1327 = vmul.f32 %v586, %v1279
        %v1328 = vmul.f32 %v586, %v1280
        %v1329 = vmul.f32 %v586, %v1281
        %v1330 = vmul.f32 %v586, %v1282
        %v1331 = vmul.f32 %v586, %v1283
        %v1332 = vmul.f32 %v586, %v1284
        %v1333 = vadd.f32 %v1116, %v1317
        %v1334 = vadd.f32 %v1117, %v1318
        %v1335 = vadd.f32 %v1118, %v1319
        %v1336 = vadd.f32 %v1119, %v1320
        %v1337 = vadd.f32 %v1120, %v1321
        %v1338 = vadd.f32 %v1121, %v1322
        %v1339 = vadd.f32 %v1122, %v1323
        %v1340 = vadd.f32 %v1123, %v1324
        %v1341 = vadd.f32 %v1124, %v1325
        %v1342 = vadd.f32 %v1125, %v1326
        %v1343 = vadd.f32 %v1126, %v1327
        %v1344 = vadd.f32 %v1127, %v1328
        %v1345 = vadd.f32 %v1128, %v1329
        %v1346 = vadd.f32 %v1129, %v1330
        %v1347 = vadd.f32 %v1130, %v1331
        %v1348 = vadd.f32 %v1131, %v1332
        %v1349 = vpack.c.bf16 %v1270, %v1269
        %v1350 = vpack.c.bf16 %v1272, %v1271
        %v1351 = vpack.c.bf16 %v1274, %v1273
        %v1352 = vpack.c.bf16 %v1276, %v1275
        %v1353 = vpack.c.bf16 %v1278, %v1277
        %v1354 = vpack.c.bf16 %v1280, %v1279
        %v1355 = vpack.c.bf16 %v1282, %v1281
        %v1356 = vpack.c.bf16 %v1284, %v1283
        %1357 = vmatprep.subr.bf16.mxu0 0
        %1358 = vmatpush1.bf16.msra.mxu0 %v552
        %1359 = vmatprep.subr.bf16.mxu0 0
        %1360 = vmatpush1.bf16.msra.mxu0 %v551
        %1361 = vmatprep.subr.bf16.mxu0 0
        %1362 = vmatpush1.bf16.msra.mxu0 %v550
        %1363 = vmatprep.subr.bf16.mxu0 0
        %1364 = vmatpush1.bf16.msra.mxu0 %v549
        %1365 = vmatprep.subr.bf16.mxu0 0
        %1366 = vmatpush1.bf16.msra.mxu0 %v548
        %1367 = vmatprep.subr.bf16.mxu0 0
        %1368 = vmatpush1.bf16.msra.mxu0 %v547
        %1369 = vmatprep.subr.bf16.mxu0 0
        %1370 = vmatpush1.bf16.msra.mxu0 %v546
        %1371 = vmatprep.subr.bf16.mxu0 0
        %1372 = vmatpush1.bf16.msra.mxu0 %v545
        %1373 = vmatprep.subr.bf16.mxu0 0
        %1374 = vmatpush2.bf16.msra.mxu0 0
        %1375 = vmatprep.subr.bf16.mxu0 0
        %1376 = vmatpush2.bf16.msra.mxu0 0
        %1377 = vmatprep.subr.bf16.mxu0 0
        %1378 = vmatpush2.bf16.msra.mxu0 0
        %1379 = vmatprep.subr.bf16.mxu0 0
        %1380 = vmatpush2.bf16.msra.mxu0 0
        %1381 = vmatprep.subr.bf16.mxu0 0
        %1382 = vmatpush2.bf16.msra.mxu0 0
        %1383 = vmatprep.subr.bf16.mxu0 0
        %1384 = vmatpush2.bf16.msra.mxu0 0
        %1385 = vmatprep.subr.bf16.mxu0 0
        %1386 = vmatpush2.bf16.msra.mxu0 0
        %1387 = vmatprep.subr.bf16.mxu0 0
        %1388 = vmatpush2.bf16.msra.mxu0 0
        %1389 = vmatprep.mubr.bf16.mxu0 0
        %1390 = vmatmul.mubr.bf16.gmra.mxu0 %v1349
        %v1391 = vpop.f32.mrf.mxu0
        %v1392 = vadd.f32 0.0, %v1391
        %v1393 = vpop.f32.mrf.mxu0
        %v1394 = vpop.f32.mrf.mxu0
        %v1395 = vadd.f32 0.0, %v1394
        %v1396 = vpop.f32.mrf.mxu0
        %1397 = vmatprep.mubr.bf16.mxu0 0
        %1398 = vmatmul.mubr.bf16.gmra.mxu0 %v1350
        %v1399 = vpop.f32.mrf.mxu0
        %v1400 = vadd.f32 0.0, %v1399
        %v1401 = vpop.f32.mrf.mxu0
        %v1402 = vpop.f32.mrf.mxu0
        %v1403 = vadd.f32 0.0, %v1402
        %v1404 = vpop.f32.mrf.mxu0
        %1405 = vmatprep.mubr.bf16.mxu0 0
        %1406 = vmatmul.mubr.bf16.gmra.mxu0 %v1351
        %v1407 = vpop.f32.mrf.mxu0
        %v1408 = vadd.f32 0.0, %v1407
        %v1409 = vpop.f32.mrf.mxu0
        %v1410 = vpop.f32.mrf.mxu0
        %v1411 = vadd.f32 0.0, %v1410
        %v1412 = vpop.f32.mrf.mxu0
        %1413 = vmatprep.mubr.bf16.mxu0 0
        %1414 = vmatmul.mubr.bf16.gmra.mxu0 %v1352
        %v1415 = vpop.f32.mrf.mxu0
        %v1416 = vadd.f32 0.0, %v1415
        %v1417 = vpop.f32.mrf.mxu0
        %v1418 = vpop.f32.mrf.mxu0
        %v1419 = vadd.f32 0.0, %v1418
        %v1420 = vpop.f32.mrf.mxu0
        %1421 = vmatprep.mubr.bf16.mxu0 0
        %1422 = vmatmul.mubr.bf16.gmra.mxu0 %v1353
        %v1423 = vpop.f32.mrf.mxu0
        %v1424 = vadd.f32 0.0, %v1423
        %v1425 = vpop.f32.mrf.mxu0
        %v1426 = vpop.f32.mrf.mxu0
        %v1427 = vadd.f32 0.0, %v1426
        %v1428 = vpop.f32.mrf.mxu0
        %1429 = vmatprep.mubr.bf16.mxu0 0
        %1430 = vmatmul.mubr.bf16.gmra.mxu0 %v1354
        %v1431 = vpop.f32.mrf.mxu0
        %v1432 = vadd.f32 0.0, %v1431
        %v1433 = vpop.f32.mrf.mxu0
        %v1434 = vpop.f32.mrf.mxu0
        %v1435 = vadd.f32 0.0, %v1434
        %v1436 = vpop.f32.mrf.mxu0
        %1437 = vmatprep.mubr.bf16.mxu0 0
        %1438 = vmatmul.mubr.bf16.gmra.mxu0 %v1355
        %v1439 = vpop.f32.mrf.mxu0
        %v1440 = vadd.f32 0.0, %v1439
        %v1441 = vpop.f32.mrf.mxu0
        %v1442 = vpop.f32.mrf.mxu0
        %v1443 = vadd.f32 0.0, %v1442
        %v1444 = vpop.f32.mrf.mxu0
        %1445 = vmatprep.mubr.bf16.mxu0 0
        %1446 = vmatmul.mubr.bf16.gmra.mxu0 %v1356
        %v1447 = vpop.f32.mrf.mxu0
        %v1448 = vadd.f32 0.0, %v1447
        %v1449 = vpop.f32.mrf.mxu0
        %v1450 = vpop.f32.mrf.mxu0
        %v1451 = vadd.f32 0.0, %v1450
        %v1452 = vpop.f32.mrf.mxu0
        %1453 = vdwg.mxu0
        %v1454 = vmul.f32 %v529, %v1392
        %v1455 = vmul.f32 %v530, %v1395
        %v1456 = vmul.f32 %v531, %v1400
        %v1457 = vmul.f32 %v532, %v1403
        %v1458 = vmul.f32 %v533, %v1408
        %v1459 = vmul.f32 %v534, %v1411
        %v1460 = vmul.f32 %v535, %v1416
        %v1461 = vmul.f32 %v536, %v1419
        %v1462 = vmul.f32 %v537, %v1424
        %v1463 = vmul.f32 %v538, %v1427
        %v1464 = vmul.f32 %v539, %v1432
        %v1465 = vmul.f32 %v540, %v1435
        %v1466 = vmul.f32 %v541, %v1440
        %v1467 = vmul.f32 %v542, %v1443
        %v1468 = vmul.f32 %v543, %v1448
        %v1469 = vmul.f32 %v544, %v1451
        %v1470 = vsub.f32 %v1454, %v1269
        %v1471 = vsub.f32 %v1455, %v1270
        %v1472 = vsub.f32 %v1456, %v1271
        %v1473 = vsub.f32 %v1457, %v1272
        %v1474 = vsub.f32 %v1458, %v1273
        %v1475 = vsub.f32 %v1459, %v1274
        %v1476 = vsub.f32 %v1460, %v1275
        %v1477 = vsub.f32 %v1461, %v1276
        %v1478 = vsub.f32 %v1462, %v1277
        %v1479 = vsub.f32 %v1463, %v1278
        %v1480 = vsub.f32 %v1464, %v1279
        %v1481 = vsub.f32 %v1465, %v1280
        %v1482 = vsub.f32 %v1466, %v1281
        %v1483 = vsub.f32 %v1467, %v1282
        %v1484 = vsub.f32 %v1468, %v1283
        %v1485 = vsub.f32 %v1469, %v1284
        %v1486 = vmul.f32 %v757, %v1470
        %v1487 = vmul.f32 %v757, %v1471
        %v1488 = vmul.f32 %v757, %v1472
        %v1489 = vmul.f32 %v757, %v1473
        %v1490 = vmul.f32 %v757, %v1474
        %v1491 = vmul.f32 %v757, %v1475
        %v1492 = vmul.f32 %v757, %v1476
        %v1493 = vmul.f32 %v757, %v1477
        %v1494 = vmul.f32 %v757, %v1478
        %v1495 = vmul.f32 %v757, %v1479
        %v1496 = vmul.f32 %v757, %v1480
        %v1497 = vmul.f32 %v757, %v1481
        %v1498 = vmul.f32 %v757, %v1482
        %v1499 = vmul.f32 %v757, %v1483
        %v1500 = vmul.f32 %v757, %v1484
        %v1501 = vmul.f32 %v757, %v1485
        %v1502 = vadd.f32 %v1333, %v1486
        %v1503 = vadd.f32 %v1334, %v1487
        %v1504 = vadd.f32 %v1335, %v1488
        %v1505 = vadd.f32 %v1336, %v1489
        %v1506 = vadd.f32 %v1337, %v1490
        %v1507 = vadd.f32 %v1338, %v1491
        %v1508 = vadd.f32 %v1339, %v1492
        %v1509 = vadd.f32 %v1340, %v1493
        %v1510 = vadd.f32 %v1341, %v1494
        %v1511 = vadd.f32 %v1342, %v1495
        %v1512 = vadd.f32 %v1343, %v1496
        %v1513 = vadd.f32 %v1344, %v1497
        %v1514 = vadd.f32 %v1345, %v1498
        %v1515 = vadd.f32 %v1346, %v1499
        %v1516 = vadd.f32 %v1347, %v1500
        %v1517 = vadd.f32 %v1348, %v1501
        %v1518 = vpack.c.bf16 %v1471, %v1470
        %v1519 = vpack.c.bf16 %v1473, %v1472
        %v1520 = vpack.c.bf16 %v1475, %v1474
        %v1521 = vpack.c.bf16 %v1477, %v1476
        %v1522 = vpack.c.bf16 %v1479, %v1478
        %v1523 = vpack.c.bf16 %v1481, %v1480
        %v1524 = vpack.c.bf16 %v1483, %v1482
        %v1525 = vpack.c.bf16 %v1485, %v1484
        %1526 = vmatprep.subr.bf16.mxu0 0
        %1527 = vmatpush1.bf16.msra.mxu0 %v552
        %1528 = vmatprep.subr.bf16.mxu0 0
        %1529 = vmatpush1.bf16.msra.mxu0 %v551
        %1530 = vmatprep.subr.bf16.mxu0 0
        %1531 = vmatpush1.bf16.msra.mxu0 %v550
        %1532 = vmatprep.subr.bf16.mxu0 0
        %1533 = vmatpush1.bf16.msra.mxu0 %v549
        %1534 = vmatprep.subr.bf16.mxu0 0
        %1535 = vmatpush1.bf16.msra.mxu0 %v548
        %1536 = vmatprep.subr.bf16.mxu0 0
        %1537 = vmatpush1.bf16.msra.mxu0 %v547
        %1538 = vmatprep.subr.bf16.mxu0 0
        %1539 = vmatpush1.bf16.msra.mxu0 %v546
        %1540 = vmatprep.subr.bf16.mxu0 0
        %1541 = vmatpush1.bf16.msra.mxu0 %v545
        %1542 = vmatprep.subr.bf16.mxu0 0
        %1543 = vmatpush2.bf16.msra.mxu0 0
        %1544 = vmatprep.subr.bf16.mxu0 0
        %1545 = vmatpush2.bf16.msra.mxu0 0
        %1546 = vmatprep.subr.bf16.mxu0 0
        %1547 = vmatpush2.bf16.msra.mxu0 0
        %1548 = vmatprep.subr.bf16.mxu0 0
        %1549 = vmatpush2.bf16.msra.mxu0 0
        %1550 = vmatprep.subr.bf16.mxu0 0
        %1551 = vmatpush2.bf16.msra.mxu0 0
        %1552 = vmatprep.subr.bf16.mxu0 0
        %1553 = vmatpush2.bf16.msra.mxu0 0
        %1554 = vmatprep.subr.bf16.mxu0 0
        %1555 = vmatpush2.bf16.msra.mxu0 0
        %1556 = vmatprep.subr.bf16.mxu0 0
        %1557 = vmatpush2.bf16.msra.mxu0 0
        %1558 = vmatprep.mubr.bf16.mxu0 0
        %1559 = vmatmul.mubr.bf16.gmra.mxu0 %v1518
        %v1560 = vpop.f32.mrf.mxu0
        %v1561 = vadd.f32 0.0, %v1560
        %v1562 = vpop.f32.mrf.mxu0
        %v1563 = vpop.f32.mrf.mxu0
        %v1564 = vadd.f32 0.0, %v1563
        %v1565 = vpop.f32.mrf.mxu0
        %1566 = vmatprep.mubr.bf16.mxu0 0
        %1567 = vmatmul.mubr.bf16.gmra.mxu0 %v1519
        %v1568 = vpop.f32.mrf.mxu0
        %v1569 = vadd.f32 0.0, %v1568
        %v1570 = vpop.f32.mrf.mxu0
        %v1571 = vpop.f32.mrf.mxu0
        %v1572 = vadd.f32 0.0, %v1571
        %v1573 = vpop.f32.mrf.mxu0
        %1574 = vmatprep.mubr.bf16.mxu0 0
        %1575 = vmatmul.mubr.bf16.gmra.mxu0 %v1520
        %v1576 = vpop.f32.mrf.mxu0
        %v1577 = vadd.f32 0.0, %v1576
        %v1578 = vpop.f32.mrf.mxu0
        %v1579 = vpop.f32.mrf.mxu0
        %v1580 = vadd.f32 0.0, %v1579
        %v1581 = vpop.f32.mrf.mxu0
        %1582 = vmatprep.mubr.bf16.mxu0 0
        %1583 = vmatmul.mubr.bf16.gmra.mxu0 %v1521
        %v1584 = vpop.f32.mrf.mxu0
        %v1585 = vadd.f32 0.0, %v1584
        %v1586 = vpop.f32.mrf.mxu0
        %v1587 = vpop.f32.mrf.mxu0
        %v1588 = vadd.f32 0.0, %v1587
        %v1589 = vpop.f32.mrf.mxu0
        %1590 = vmatprep.mubr.bf16.mxu0 0
        %1591 = vmatmul.mubr.bf16.gmra.mxu0 %v1522
        %v1592 = vpop.f32.mrf.mxu0
        %v1593 = vadd.f32 0.0, %v1592
        %v1594 = vpop.f32.mrf.mxu0
        %v1595 = vpop.f32.mrf.mxu0
        %v1596 = vadd.f32 0.0, %v1595
        %v1597 = vpop.f32.mrf.mxu0
        %1598 = vmatprep.mubr.bf16.mxu0 0
        %1599 = vmatmul.mubr.bf16.gmra.mxu0 %v1523
        %v1600 = vpop.f32.mrf.mxu0
        %v1601 = vadd.f32 0.0, %v1600
        %v1602 = vpop.f32.mrf.mxu0
        %v1603 = vpop.f32.mrf.mxu0
        %v1604 = vadd.f32 0.0, %v1603
        %v1605 = vpop.f32.mrf.mxu0
        %1606 = vmatprep.mubr.bf16.mxu0 0
        %1607 = vmatmul.mubr.bf16.gmra.mxu0 %v1524
        %v1608 = vpop.f32.mrf.mxu0
        %v1609 = vadd.f32 0.0, %v1608
        %v1610 = vpop.f32.mrf.mxu0
        %v1611 = vpop.f32.mrf.mxu0
        %v1612 = vadd.f32 0.0, %v1611
        %v1613 = vpop.f32.mrf.mxu0
        %1614 = vmatprep.mubr.bf16.mxu0 0
        %1615 = vmatmul.mubr.bf16.gmra.mxu0 %v1525
        %v1616 = vpop.f32.mrf.mxu0
        %v1617 = vadd.f32 0.0, %v1616
        %v1618 = vpop.f32.mrf.mxu0
        %v1619 = vpop.f32.mrf.mxu0
        %v1620 = vadd.f32 0.0, %v1619
        %v1621 = vpop.f32.mrf.mxu0
        %1622 = vdwg.mxu0
        %v1623 = vmul.f32 %v529, %v1561
        %v1624 = vmul.f32 %v530, %v1564
        %v1625 = vmul.f32 %v531, %v1569
        %v1626 = vmul.f32 %v532, %v1572
        %v1627 = vmul.f32 %v533, %v1577
        %v1628 = vmul.f32 %v534, %v1580
        %v1629 = vmul.f32 %v535, %v1585
        %v1630 = vmul.f32 %v536, %v1588
        %v1631 = vmul.f32 %v537, %v1593
        %v1632 = vmul.f32 %v538, %v1596
        %v1633 = vmul.f32 %v539, %v1601
        %v1634 = vmul.f32 %v540, %v1604
        %v1635 = vmul.f32 %v541, %v1609
        %v1636 = vmul.f32 %v542, %v1612
        %v1637 = vmul.f32 %v543, %v1617
        %v1638 = vmul.f32 %v544, %v1620
        %v1639 = vsub.f32 %v1623, %v1470
        %v1640 = vsub.f32 %v1624, %v1471
        %v1641 = vsub.f32 %v1625, %v1472
        %v1642 = vsub.f32 %v1626, %v1473
        %v1643 = vsub.f32 %v1627, %v1474
        %v1644 = vsub.f32 %v1628, %v1475
        %v1645 = vsub.f32 %v1629, %v1476
        %v1646 = vsub.f32 %v1630, %v1477
        %v1647 = vsub.f32 %v1631, %v1478
        %v1648 = vsub.f32 %v1632, %v1479
        %v1649 = vsub.f32 %v1633, %v1480
        %v1650 = vsub.f32 %v1634, %v1481
        %v1651 = vsub.f32 %v1635, %v1482
        %v1652 = vsub.f32 %v1636, %v1483
        %v1653 = vsub.f32 %v1637, %v1484
        %v1654 = vsub.f32 %v1638, %v1485
        %v1655 = vmul.f32 %v928, %v1639
        %v1656 = vmul.f32 %v928, %v1640
        %v1657 = vmul.f32 %v928, %v1641
        %v1658 = vmul.f32 %v928, %v1642
        %v1659 = vmul.f32 %v928, %v1643
        %v1660 = vmul.f32 %v928, %v1644
        %v1661 = vmul.f32 %v928, %v1645
        %v1662 = vmul.f32 %v928, %v1646
        %v1663 = vmul.f32 %v928, %v1647
        %v1664 = vmul.f32 %v928, %v1648
        %v1665 = vmul.f32 %v928, %v1649
        %v1666 = vmul.f32 %v928, %v1650
        %v1667 = vmul.f32 %v928, %v1651
        %v1668 = vmul.f32 %v928, %v1652
        %v1669 = vmul.f32 %v928, %v1653
        %v1670 = vmul.f32 %v928, %v1654
        %v1671 = vadd.f32 %v1502, %v1655
        %v1672 = vadd.f32 %v1503, %v1656
        %v1673 = vadd.f32 %v1504, %v1657
        %v1674 = vadd.f32 %v1505, %v1658
        %v1675 = vadd.f32 %v1506, %v1659
        %v1676 = vadd.f32 %v1507, %v1660
        %v1677 = vadd.f32 %v1508, %v1661
        %v1678 = vadd.f32 %v1509, %v1662
        %v1679 = vadd.f32 %v1510, %v1663
        %v1680 = vadd.f32 %v1511, %v1664
        %v1681 = vadd.f32 %v1512, %v1665
        %v1682 = vadd.f32 %v1513, %v1666
        %v1683 = vadd.f32 %v1514, %v1667
        %v1684 = vadd.f32 %v1515, %v1668
        %v1685 = vadd.f32 %v1516, %v1669
        %v1686 = vadd.f32 %v1517, %v1670
        %v1687 = vpack.c.bf16 %v1640, %v1639
        %v1688 = vpack.c.bf16 %v1642, %v1641
        %v1689 = vpack.c.bf16 %v1644, %v1643
        %v1690 = vpack.c.bf16 %v1646, %v1645
        %v1691 = vpack.c.bf16 %v1648, %v1647
        %v1692 = vpack.c.bf16 %v1650, %v1649
        %v1693 = vpack.c.bf16 %v1652, %v1651
        %v1694 = vpack.c.bf16 %v1654, %v1653
        %1695 = vmatprep.subr.bf16.mxu0 0
        %1696 = vmatpush1.bf16.msra.mxu0 %v552
        %1697 = vmatprep.subr.bf16.mxu0 0
        %1698 = vmatpush1.bf16.msra.mxu0 %v551
        %1699 = vmatprep.subr.bf16.mxu0 0
        %1700 = vmatpush1.bf16.msra.mxu0 %v550
        %1701 = vmatprep.subr.bf16.mxu0 0
        %1702 = vmatpush1.bf16.msra.mxu0 %v549
        %1703 = vmatprep.subr.bf16.mxu0 0
        %1704 = vmatpush1.bf16.msra.mxu0 %v548
        %1705 = vmatprep.subr.bf16.mxu0 0
        %1706 = vmatpush1.bf16.msra.mxu0 %v547
        %1707 = vmatprep.subr.bf16.mxu0 0
        %1708 = vmatpush1.bf16.msra.mxu0 %v546
        %1709 = vmatprep.subr.bf16.mxu0 0
        %1710 = vmatpush1.bf16.msra.mxu0 %v545
        %1711 = vmatprep.subr.bf16.mxu0 0
        %1712 = vmatpush2.bf16.msra.mxu0 0
        %1713 = vmatprep.subr.bf16.mxu0 0
        %1714 = vmatpush2.bf16.msra.mxu0 0
        %1715 = vmatprep.subr.bf16.mxu0 0
        %1716 = vmatpush2.bf16.msra.mxu0 0
        %1717 = vmatprep.subr.bf16.mxu0 0
        %1718 = vmatpush2.bf16.msra.mxu0 0
        %1719 = vmatprep.subr.bf16.mxu0 0
        %1720 = vmatpush2.bf16.msra.mxu0 0
        %1721 = vmatprep.subr.bf16.mxu0 0
        %1722 = vmatpush2.bf16.msra.mxu0 0
        %1723 = vmatprep.subr.bf16.mxu0 0
        %1724 = vmatpush2.bf16.msra.mxu0 0
        %1725 = vmatprep.subr.bf16.mxu0 0
        %1726 = vmatpush2.bf16.msra.mxu0 0
        %1727 = vmatprep.mubr.bf16.mxu0 0
        %1728 = vmatmul.mubr.bf16.gmra.mxu0 %v1687
        %v1729 = vpop.f32.mrf.mxu0
        %v1730 = vadd.f32 0.0, %v1729
        %v1731 = vpop.f32.mrf.mxu0
        %v1732 = vpop.f32.mrf.mxu0
        %v1733 = vadd.f32 0.0, %v1732
        %v1734 = vpop.f32.mrf.mxu0
        %1735 = vmatprep.mubr.bf16.mxu0 0
        %1736 = vmatmul.mubr.bf16.gmra.mxu0 %v1688
        %v1737 = vpop.f32.mrf.mxu0
        %v1738 = vadd.f32 0.0, %v1737
        %v1739 = vpop.f32.mrf.mxu0
        %v1740 = vpop.f32.mrf.mxu0
        %v1741 = vadd.f32 0.0, %v1740
        %v1742 = vpop.f32.mrf.mxu0
        %1743 = vmatprep.mubr.bf16.mxu0 0
        %1744 = vmatmul.mubr.bf16.gmra.mxu0 %v1689
        %v1745 = vpop.f32.mrf.mxu0
        %v1746 = vadd.f32 0.0, %v1745
        %v1747 = vpop.f32.mrf.mxu0
        %v1748 = vpop.f32.mrf.mxu0
        %v1749 = vadd.f32 0.0, %v1748
        %v1750 = vpop.f32.mrf.mxu0
        %1751 = vmatprep.mubr.bf16.mxu0 0
        %1752 = vmatmul.mubr.bf16.gmra.mxu0 %v1690
        %v1753 = vpop.f32.mrf.mxu0
        %v1754 = vadd.f32 0.0, %v1753
        %v1755 = vpop.f32.mrf.mxu0
        %v1756 = vpop.f32.mrf.mxu0
        %v1757 = vadd.f32 0.0, %v1756
        %v1758 = vpop.f32.mrf.mxu0
        %1759 = vmatprep.mubr.bf16.mxu0 0
        %1760 = vmatmul.mubr.bf16.gmra.mxu0 %v1691
        %v1761 = vpop.f32.mrf.mxu0
        %v1762 = vadd.f32 0.0, %v1761
        %v1763 = vpop.f32.mrf.mxu0
        %v1764 = vpop.f32.mrf.mxu0
        %v1765 = vadd.f32 0.0, %v1764
        %v1766 = vpop.f32.mrf.mxu0
        %1767 = vmatprep.mubr.bf16.mxu0 0
        %1768 = vmatmul.mubr.bf16.gmra.mxu0 %v1692
        %v1769 = vpop.f32.mrf.mxu0
        %v1770 = vadd.f32 0.0, %v1769
        %v1771 = vpop.f32.mrf.mxu0
        %v1772 = vpop.f32.mrf.mxu0
        %v1773 = vadd.f32 0.0, %v1772
        %v1774 = vpop.f32.mrf.mxu0
        %1775 = vmatprep.mubr.bf16.mxu0 0
        %1776 = vmatmul.mubr.bf16.gmra.mxu0 %v1693
        %v1777 = vpop.f32.mrf.mxu0
        %v1778 = vadd.f32 0.0, %v1777
        %v1779 = vpop.f32.mrf.mxu0
        %v1780 = vpop.f32.mrf.mxu0
        %v1781 = vadd.f32 0.0, %v1780
        %v1782 = vpop.f32.mrf.mxu0
        %1783 = vmatprep.mubr.bf16.mxu0 0
        %1784 = vmatmul.mubr.bf16.gmra.mxu0 %v1694
        %v1785 = vpop.f32.mrf.mxu0
        %v1786 = vadd.f32 0.0, %v1785
        %v1787 = vpop.f32.mrf.mxu0
        %v1788 = vpop.f32.mrf.mxu0
        %v1789 = vadd.f32 0.0, %v1788
        %v1790 = vpop.f32.mrf.mxu0
        %1791 = vdwg.mxu0
        %v1792 = vmul.f32 %v529, %v1730
        %v1793 = vmul.f32 %v530, %v1733
        %v1794 = vmul.f32 %v531, %v1738
        %v1795 = vmul.f32 %v532, %v1741
        %v1796 = vmul.f32 %v533, %v1746
        %v1797 = vmul.f32 %v534, %v1749
        %v1798 = vmul.f32 %v535, %v1754
        %v1799 = vmul.f32 %v536, %v1757
        %v1800 = vmul.f32 %v537, %v1762
        %v1801 = vmul.f32 %v538, %v1765
        %v1802 = vmul.f32 %v539, %v1770
        %v1803 = vmul.f32 %v540, %v1773
        %v1804 = vmul.f32 %v541, %v1778
        %v1805 = vmul.f32 %v542, %v1781
        %v1806 = vmul.f32 %v543, %v1786
        %v1807 = vmul.f32 %v544, %v1789
        %v1808 = vsub.f32 %v1792, %v1639
        %v1809 = vsub.f32 %v1793, %v1640
        %v1810 = vsub.f32 %v1794, %v1641
        %v1811 = vsub.f32 %v1795, %v1642
        %v1812 = vsub.f32 %v1796, %v1643
        %v1813 = vsub.f32 %v1797, %v1644
        %v1814 = vsub.f32 %v1798, %v1645
        %v1815 = vsub.f32 %v1799, %v1646
        %v1816 = vsub.f32 %v1800, %v1647
        %v1817 = vsub.f32 %v1801, %v1648
        %v1818 = vsub.f32 %v1802, %v1649
        %v1819 = vsub.f32 %v1803, %v1650
        %v1820 = vsub.f32 %v1804, %v1651
        %v1821 = vsub.f32 %v1805, %v1652
        %v1822 = vsub.f32 %v1806, %v1653
        %v1823 = vsub.f32 %v1807, %v1654
        %v1824 = vmul.f32 %v1099, %v1808
        %v1825 = vmul.f32 %v1099, %v1809
        %v1826 = vmul.f32 %v1099, %v1810
        %v1827 = vmul.f32 %v1099, %v1811
        %v1828 = vmul.f32 %v1099, %v1812
        %v1829 = vmul.f32 %v1099, %v1813
        %v1830 = vmul.f32 %v1099, %v1814
        %v1831 = vmul.f32 %v1099, %v1815
        %v1832 = vmul.f32 %v1099, %v1816
        %v1833 = vmul.f32 %v1099, %v1817
        %v1834 = vmul.f32 %v1099, %v1818
        %v1835 = vmul.f32 %v1099, %v1819
        %v1836 = vmul.f32 %v1099, %v1820
        %v1837 = vmul.f32 %v1099, %v1821
        %v1838 = vmul.f32 %v1099, %v1822
        %v1839 = vmul.f32 %v1099, %v1823
        %v1840 = vadd.f32 %v1671, %v1824
        %v1841 = vadd.f32 %v1672, %v1825
        %v1842 = vadd.f32 %v1673, %v1826
        %v1843 = vadd.f32 %v1674, %v1827
        %v1844 = vadd.f32 %v1675, %v1828
        %v1845 = vadd.f32 %v1676, %v1829
        %v1846 = vadd.f32 %v1677, %v1830
        %v1847 = vadd.f32 %v1678, %v1831
        %v1848 = vadd.f32 %v1679, %v1832
        %v1849 = vadd.f32 %v1680, %v1833
        %v1850 = vadd.f32 %v1681, %v1834
        %v1851 = vadd.f32 %v1682, %v1835
        %v1852 = vadd.f32 %v1683, %v1836
        %v1853 = vadd.f32 %v1684, %v1837
        %v1854 = vadd.f32 %v1685, %v1838
        %v1855 = vadd.f32 %v1686, %v1839
        %v1856 = vpack.c.bf16 %v1841, %v1840
        %v1857 = vpack.c.bf16 %v1843, %v1842
        %v1858 = vpack.c.bf16 %v1845, %v1844
        %v1859 = vpack.c.bf16 %v1847, %v1846
        %v1860 = vpack.c.bf16 %v1849, %v1848
        %v1861 = vpack.c.bf16 %v1851, %v1850
        %v1862 = vpack.c.bf16 %v1853, %v1852
        %v1863 = vpack.c.bf16 %v1855, %v1854
        %1864 = vmatprep.subr.bf16.mxu0 0
        %1865 = vmatpush1.bf16.msra.mxu0 %v552
        %1866 = vmatprep.subr.bf16.mxu0 0
        %1867 = vmatpush1.bf16.msra.mxu0 %v551
        %1868 = vmatprep.subr.bf16.mxu0 0
        %1869 = vmatpush1.bf16.msra.mxu0 %v550
        %1870 = vmatprep.subr.bf16.mxu0 0
        %1871 = vmatpush1.bf16.msra.mxu0 %v549
        %1872 = vmatprep.subr.bf16.mxu0 0
        %1873 = vmatpush1.bf16.msra.mxu0 %v548
        %1874 = vmatprep.subr.bf16.mxu0 0
        %1875 = vmatpush1.bf16.msra.mxu0 %v547
        %1876 = vmatprep.subr.bf16.mxu0 0
        %1877 = vmatpush1.bf16.msra.mxu0 %v546
        %1878 = vmatprep.subr.bf16.mxu0 0
        %1879 = vmatpush1.bf16.msra.mxu0 %v545
        %1880 = vmatprep.subr.bf16.mxu0 0
        %1881 = vmatpush2.bf16.msra.mxu0 0
        %1882 = vmatprep.subr.bf16.mxu0 0
        %1883 = vmatpush2.bf16.msra.mxu0 0
        %1884 = vmatprep.subr.bf16.mxu0 0
        %1885 = vmatpush2.bf16.msra.mxu0 0
        %1886 = vmatprep.subr.bf16.mxu0 0
        %1887 = vmatpush2.bf16.msra.mxu0 0
        %1888 = vmatprep.subr.bf16.mxu0 0
        %1889 = vmatpush2.bf16.msra.mxu0 0
        %1890 = vmatprep.subr.bf16.mxu0 0
        %1891 = vmatpush2.bf16.msra.mxu0 0
        %1892 = vmatprep.subr.bf16.mxu0 0
        %1893 = vmatpush2.bf16.msra.mxu0 0
        %1894 = vmatprep.subr.bf16.mxu0 0
        %1895 = vmatpush2.bf16.msra.mxu0 0
        %1896 = vmatprep.mubr.bf16.mxu0 0
        %1897 = vmatmul.mubr.bf16.gmra.mxu0 %v1856
        %v1898 = vpop.f32.mrf.mxu0
        %v1899 = vadd.f32 0.0, %v1898
        %v1900 = vpop.f32.mrf.mxu0
        %v1901 = vpop.f32.mrf.mxu0
        %v1902 = vadd.f32 0.0, %v1901
        %v1903 = vpop.f32.mrf.mxu0
        %1904 = vmatprep.mubr.bf16.mxu0 0
        %1905 = vmatmul.mubr.bf16.gmra.mxu0 %v1857
        %v1906 = vpop.f32.mrf.mxu0
        %v1907 = vadd.f32 0.0, %v1906
        %v1908 = vpop.f32.mrf.mxu0
        %v1909 = vpop.f32.mrf.mxu0
        %v1910 = vadd.f32 0.0, %v1909
        %v1911 = vpop.f32.mrf.mxu0
        %1912 = vmatprep.mubr.bf16.mxu0 0
        %1913 = vmatmul.mubr.bf16.gmra.mxu0 %v1858
        %v1914 = vpop.f32.mrf.mxu0
        %v1915 = vadd.f32 0.0, %v1914
        %v1916 = vpop.f32.mrf.mxu0
        %v1917 = vpop.f32.mrf.mxu0
        %v1918 = vadd.f32 0.0, %v1917
        %v1919 = vpop.f32.mrf.mxu0
        %1920 = vmatprep.mubr.bf16.mxu0 0
        %1921 = vmatmul.mubr.bf16.gmra.mxu0 %v1859
        %v1922 = vpop.f32.mrf.mxu0
        %v1923 = vadd.f32 0.0, %v1922
        %v1924 = vpop.f32.mrf.mxu0
        %v1925 = vpop.f32.mrf.mxu0
        %v1926 = vadd.f32 0.0, %v1925
        %v1927 = vpop.f32.mrf.mxu0
        %1928 = vmatprep.mubr.bf16.mxu0 0
        %1929 = vmatmul.mubr.bf16.gmra.mxu0 %v1860
        %v1930 = vpop.f32.mrf.mxu0
        %v1931 = vadd.f32 0.0, %v1930
        %v1932 = vpop.f32.mrf.mxu0
        %v1933 = vpop.f32.mrf.mxu0
        %v1934 = vadd.f32 0.0, %v1933
        %v1935 = vpop.f32.mrf.mxu0
        %1936 = vmatprep.mubr.bf16.mxu0 0
        %1937 = vmatmul.mubr.bf16.gmra.mxu0 %v1861
        %v1938 = vpop.f32.mrf.mxu0
        %v1939 = vadd.f32 0.0, %v1938
        %v1940 = vpop.f32.mrf.mxu0
        %v1941 = vpop.f32.mrf.mxu0
        %v1942 = vadd.f32 0.0, %v1941
        %v1943 = vpop.f32.mrf.mxu0
        %1944 = vmatprep.mubr.bf16.mxu0 0
        %1945 = vmatmul.mubr.bf16.gmra.mxu0 %v1862
        %v1946 = vpop.f32.mrf.mxu0
        %v1947 = vadd.f32 0.0, %v1946
        %v1948 = vpop.f32.mrf.mxu0
        %v1949 = vpop.f32.mrf.mxu0
        %v1950 = vadd.f32 0.0, %v1949
        %v1951 = vpop.f32.mrf.mxu0
        %1952 = vmatprep.mubr.bf16.mxu0 0
        %1953 = vmatmul.mubr.bf16.gmra.mxu0 %v1863
        %v1954 = vpop.f32.mrf.mxu0
        %v1955 = vadd.f32 0.0, %v1954
        %v1956 = vpop.f32.mrf.mxu0
        %v1957 = vpop.f32.mrf.mxu0
        %v1958 = vadd.f32 0.0, %v1957
        %v1959 = vpop.f32.mrf.mxu0
        %1960 = vdwg.mxu0
        %v1961 = vmul.f32 %v529, %v1899
        %v1962 = vmul.f32 %v530, %v1902
        %v1963 = vmul.f32 %v531, %v1907
        %v1964 = vmul.f32 %v532, %v1910
        %v1965 = vmul.f32 %v533, %v1915
        %v1966 = vmul.f32 %v534, %v1918
        %v1967 = vmul.f32 %v535, %v1923
        %v1968 = vmul.f32 %v536, %v1926
        %v1969 = vmul.f32 %v537, %v1931
        %v1970 = vmul.f32 %v538, %v1934
        %v1971 = vmul.f32 %v539, %v1939
        %v1972 = vmul.f32 %v540, %v1942
        %v1973 = vmul.f32 %v541, %v1947
        %v1974 = vmul.f32 %v542, %v1950
        %v1975 = vmul.f32 %v543, %v1955
        %v1976 = vmul.f32 %v544, %v1958
        %v1977 = vsub.f32 %v1961, %v1840
        %v1978 = vsub.f32 %v1962, %v1841
        %v1979 = vsub.f32 %v1963, %v1842
        %v1980 = vsub.f32 %v1964, %v1843
        %v1981 = vsub.f32 %v1965, %v1844
        %v1982 = vsub.f32 %v1966, %v1845
        %v1983 = vsub.f32 %v1967, %v1846
        %v1984 = vsub.f32 %v1968, %v1847
        %v1985 = vsub.f32 %v1969, %v1848
        %v1986 = vsub.f32 %v1970, %v1849
        %v1987 = vsub.f32 %v1971, %v1850
        %v1988 = vsub.f32 %v1972, %v1851
        %v1989 = vsub.f32 %v1973, %v1852
        %v1990 = vsub.f32 %v1974, %v1853
        %v1991 = vsub.f32 %v1975, %v1854
        %v1992 = vsub.f32 %v1976, %v1855
        %v1993 = vsub.f32 %v1977, %v553
        %v1994 = vsub.f32 %v1978, %v554
        %v1995 = vsub.f32 %v1979, %v555
        %v1996 = vsub.f32 %v1980, %v556
        %v1997 = vsub.f32 %v1981, %v557
        %v1998 = vsub.f32 %v1982, %v558
        %v1999 = vsub.f32 %v1983, %v559
        %v2000 = vsub.f32 %v1984, %v560
        %v2001 = vsub.f32 %v1985, %v561
        %v2002 = vsub.f32 %v1986, %v562
        %v2003 = vsub.f32 %v1987, %v563
        %v2004 = vsub.f32 %v1988, %v564
        %v2005 = vsub.f32 %v1989, %v565
        %v2006 = vsub.f32 %v1990, %v566
        %v2007 = vsub.f32 %v1991, %v567
        %v2008 = vsub.f32 %v1992, %v568
        %v2009 = vmul.f32 %v1993, %v1993
        %v2010 = vmul.f32 %v1994, %v1994
        %v2011 = vmul.f32 %v1995, %v1995
        %v2012 = vmul.f32 %v1996, %v1996
        %v2013 = vmul.f32 %v1997, %v1997
        %v2014 = vmul.f32 %v1998, %v1998
        %v2015 = vmul.f32 %v1999, %v1999
        %v2016 = vmul.f32 %v2000, %v2000
        %v2017 = vmul.f32 %v2001, %v2001
        %v2018 = vmul.f32 %v2002, %v2002
        %v2019 = vmul.f32 %v2003, %v2003
        %v2020 = vmul.f32 %v2004, %v2004
        %v2021 = vmul.f32 %v2005, %v2005
        %v2022 = vmul.f32 %v2006, %v2006
        %v2023 = vmul.f32 %v2007, %v2007
        %v2024 = vmul.f32 %v2008, %v2008
        %v2025 = vmul.f32 %v2009, 4.0
        %v2026 = vmul.f32 %v2010, 4.0
        %v2027 = vmul.f32 %v2011, 4.0
        %v2028 = vmul.f32 %v2012, 4.0
        %v2029 = vmul.f32 %v2013, 4.0
        %v2030 = vmul.f32 %v2014, 4.0
        %v2031 = vmul.f32 %v2015, 4.0
        %v2032 = vmul.f32 %v2016, 4.0
        %v2033 = vmul.f32 %v2017, 4.0
        %v2034 = vmul.f32 %v2018, 4.0
        %v2035 = vmul.f32 %v2019, 4.0
        %v2036 = vmul.f32 %v2020, 4.0
        %v2037 = vmul.f32 %v2021, 4.0
        %v2038 = vmul.f32 %v2022, 4.0
        %v2039 = vmul.f32 %v2023, 4.0
        %v2040 = vmul.f32 %v2024, 4.0
        %v2041 = vadd.f32 %v1301, %v2025
        %v2042 = vadd.f32 %v1302, %v2026
        %v2043 = vadd.f32 %v1303, %v2027
        %v2044 = vadd.f32 %v1304, %v2028
        %v2045 = vadd.f32 %v1305, %v2029
        %v2046 = vadd.f32 %v1306, %v2030
        %v2047 = vadd.f32 %v1307, %v2031
        %v2048 = vadd.f32 %v1308, %v2032
        %v2049 = vadd.f32 %v1309, %v2033
        %v2050 = vadd.f32 %v1310, %v2034
        %v2051 = vadd.f32 %v1311, %v2035
        %v2052 = vadd.f32 %v1312, %v2036
        %v2053 = vadd.f32 %v1313, %v2037
        %v2054 = vadd.f32 %v1314, %v2038
        %v2055 = vadd.f32 %v1315, %v2039
        %v2056 = vadd.f32 %v1316, %v2040
        %v2057 = vmul.f32 %v586, %v1993
        %v2058 = vmul.f32 %v586, %v1994
        %v2059 = vmul.f32 %v586, %v1995
        %v2060 = vmul.f32 %v586, %v1996
        %v2061 = vmul.f32 %v586, %v1997
        %v2062 = vmul.f32 %v586, %v1998
        %v2063 = vmul.f32 %v586, %v1999
        %v2064 = vmul.f32 %v586, %v2000
        %v2065 = vmul.f32 %v586, %v2001
        %v2066 = vmul.f32 %v586, %v2002
        %v2067 = vmul.f32 %v586, %v2003
        %v2068 = vmul.f32 %v586, %v2004
        %v2069 = vmul.f32 %v586, %v2005
        %v2070 = vmul.f32 %v586, %v2006
        %v2071 = vmul.f32 %v586, %v2007
        %v2072 = vmul.f32 %v586, %v2008
        %v2073 = vadd.f32 %v1840, %v2057
        %v2074 = vadd.f32 %v1841, %v2058
        %v2075 = vadd.f32 %v1842, %v2059
        %v2076 = vadd.f32 %v1843, %v2060
        %v2077 = vadd.f32 %v1844, %v2061
        %v2078 = vadd.f32 %v1845, %v2062
        %v2079 = vadd.f32 %v1846, %v2063
        %v2080 = vadd.f32 %v1847, %v2064
        %v2081 = vadd.f32 %v1848, %v2065
        %v2082 = vadd.f32 %v1849, %v2066
        %v2083 = vadd.f32 %v1850, %v2067
        %v2084 = vadd.f32 %v1851, %v2068
        %v2085 = vadd.f32 %v1852, %v2069
        %v2086 = vadd.f32 %v1853, %v2070
        %v2087 = vadd.f32 %v1854, %v2071
        %v2088 = vadd.f32 %v1855, %v2072
        %v2089 = vpack.c.bf16 %v1994, %v1993
        %v2090 = vpack.c.bf16 %v1996, %v1995
        %v2091 = vpack.c.bf16 %v1998, %v1997
        %v2092 = vpack.c.bf16 %v2000, %v1999
        %v2093 = vpack.c.bf16 %v2002, %v2001
        %v2094 = vpack.c.bf16 %v2004, %v2003
        %v2095 = vpack.c.bf16 %v2006, %v2005
        %v2096 = vpack.c.bf16 %v2008, %v2007
        %2097 = vmatprep.subr.bf16.mxu0 0
        %2098 = vmatpush1.bf16.msra.mxu0 %v552
        %2099 = vmatprep.subr.bf16.mxu0 0
        %2100 = vmatpush1.bf16.msra.mxu0 %v551
        %2101 = vmatprep.subr.bf16.mxu0 0
        %2102 = vmatpush1.bf16.msra.mxu0 %v550
        %2103 = vmatprep.subr.bf16.mxu0 0
        %2104 = vmatpush1.bf16.msra.mxu0 %v549
        %2105 = vmatprep.subr.bf16.mxu0 0
        %2106 = vmatpush1.bf16.msra.mxu0 %v548
        %2107 = vmatprep.subr.bf16.mxu0 0
        %2108 = vmatpush1.bf16.msra.mxu0 %v547
        %2109 = vmatprep.subr.bf16.mxu0 0
        %2110 = vmatpush1.bf16.msra.mxu0 %v546
        %2111 = vmatprep.subr.bf16.mxu0 0
        %2112 = vmatpush1.bf16.msra.mxu0 %v545
        %2113 = vmatprep.subr.bf16.mxu0 0
        %2114 = vmatpush2.bf16.msra.mxu0 0
        %2115 = vmatprep.subr.bf16.mxu0 0
        %2116 = vmatpush2.bf16.msra.mxu0 0
        %2117 = vmatprep.subr.bf16.mxu0 0
        %2118 = vmatpush2.bf16.msra.mxu0 0
        %2119 = vmatprep.subr.bf16.mxu0 0
        %2120 = vmatpush2.bf16.msra.mxu0 0
        %2121 = vmatprep.subr.bf16.mxu0 0
        %2122 = vmatpush2.bf16.msra.mxu0 0
        %2123 = vmatprep.subr.bf16.mxu0 0
        %2124 = vmatpush2.bf16.msra.mxu0 0
        %2125 = vmatprep.subr.bf16.mxu0 0
        %2126 = vmatpush2.bf16.msra.mxu0 0
        %2127 = vmatprep.subr.bf16.mxu0 0
        %2128 = vmatpush2.bf16.msra.mxu0 0
        %2129 = vmatprep.mubr.bf16.mxu0 0
        %2130 = vmatmul.mubr.bf16.gmra.mxu0 %v2089
        %v2131 = vpop.f32.mrf.mxu0
        %v2132 = vadd.f32 0.0, %v2131
        %v2133 = vpop.f32.mrf.mxu0
        %v2134 = vpop.f32.mrf.mxu0
        %v2135 = vadd.f32 0.0, %v2134
        %v2136 = vpop.f32.mrf.mxu0
        %2137 = vmatprep.mubr.bf16.mxu0 0
        %2138 = vmatmul.mubr.bf16.gmra.mxu0 %v2090
        %v2139 = vpop.f32.mrf.mxu0
        %v2140 = vadd.f32 0.0, %v2139
        %v2141 = vpop.f32.mrf.mxu0
        %v2142 = vpop.f32.mrf.mxu0
        %v2143 = vadd.f32 0.0, %v2142
        %v2144 = vpop.f32.mrf.mxu0
        %2145 = vmatprep.mubr.bf16.mxu0 0
        %2146 = vmatmul.mubr.bf16.gmra.mxu0 %v2091
        %v2147 = vpop.f32.mrf.mxu0
        %v2148 = vadd.f32 0.0, %v2147
        %v2149 = vpop.f32.mrf.mxu0
        %v2150 = vpop.f32.mrf.mxu0
        %v2151 = vadd.f32 0.0, %v2150
        %v2152 = vpop.f32.mrf.mxu0
        %2153 = vmatprep.mubr.bf16.mxu0 0
        %2154 = vmatmul.mubr.bf16.gmra.mxu0 %v2092
        %v2155 = vpop.f32.mrf.mxu0
        %v2156 = vadd.f32 0.0, %v2155
        %v2157 = vpop.f32.mrf.mxu0
        %v2158 = vpop.f32.mrf.mxu0
        %v2159 = vadd.f32 0.0, %v2158
        %v2160 = vpop.f32.mrf.mxu0
        %2161 = vmatprep.mubr.bf16.mxu0 0
        %2162 = vmatmul.mubr.bf16.gmra.mxu0 %v2093
        %v2163 = vpop.f32.mrf.mxu0
        %v2164 = vadd.f32 0.0, %v2163
        %v2165 = vpop.f32.mrf.mxu0
        %v2166 = vpop.f32.mrf.mxu0
        %v2167 = vadd.f32 0.0, %v2166
        %v2168 = vpop.f32.mrf.mxu0
        %2169 = vmatprep.mubr.bf16.mxu0 0
        %2170 = vmatmul.mubr.bf16.gmra.mxu0 %v2094
        %v2171 = vpop.f32.mrf.mxu0
        %v2172 = vadd.f32 0.0, %v2171
        %v2173 = vpop.f32.mrf.mxu0
        %v2174 = vpop.f32.mrf.mxu0
        %v2175 = vadd.f32 0.0, %v2174
        %v2176 = vpop.f32.mrf.mxu0
        %2177 = vmatprep.mubr.bf16.mxu0 0
        %2178 = vmatmul.mubr.bf16.gmra.mxu0 %v2095
        %v2179 = vpop.f32.mrf.mxu0
        %v2180 = vadd.f32 0.0, %v2179
        %v2181 = vpop.f32.mrf.mxu0
        %v2182 = vpop.f32.mrf.mxu0
        %v2183 = vadd.f32 0.0, %v2182
        %v2184 = vpop.f32.mrf.mxu0
        %2185 = vmatprep.mubr.bf16.mxu0 0
        %2186 = vmatmul.mubr.bf16.gmra.mxu0 %v2096
        %v2187 = vpop.f32.mrf.mxu0
        %v2188 = vadd.f32 0.0, %v2187
        %v2189 = vpop.f32.mrf.mxu0
        %v2190 = vpop.f32.mrf.mxu0
        %v2191 = vadd.f32 0.0, %v2190
        %v2192 = vpop.f32.mrf.mxu0
        %2193 = vdwg.mxu0
        %v2194 = vmul.f32 %v529, %v2132
        %v2195 = vmul.f32 %v530, %v2135
        %v2196 = vmul.f32 %v531, %v2140
        %v2197 = vmul.f32 %v532, %v2143
        %v2198 = vmul.f32 %v533, %v2148
        %v2199 = vmul.f32 %v534, %v2151
        %v2200 = vmul.f32 %v535, %v2156
        %v2201 = vmul.f32 %v536, %v2159
        %v2202 = vmul.f32 %v537, %v2164
        %v2203 = vmul.f32 %v538, %v2167
        %v2204 = vmul.f32 %v539, %v2172
        %v2205 = vmul.f32 %v540, %v2175
        %v2206 = vmul.f32 %v541, %v2180
        %v2207 = vmul.f32 %v542, %v2183
        %v2208 = vmul.f32 %v543, %v2188
        %v2209 = vmul.f32 %v544, %v2191
        %v2210 = vsub.f32 %v2194, %v1993
        %v2211 = vsub.f32 %v2195, %v1994
        %v2212 = vsub.f32 %v2196, %v1995
        %v2213 = vsub.f32 %v2197, %v1996
        %v2214 = vsub.f32 %v2198, %v1997
        %v2215 = vsub.f32 %v2199, %v1998
        %v2216 = vsub.f32 %v2200, %v1999
        %v2217 = vsub.f32 %v2201, %v2000
        %v2218 = vsub.f32 %v2202, %v2001
        %v2219 = vsub.f32 %v2203, %v2002
        %v2220 = vsub.f32 %v2204, %v2003
        %v2221 = vsub.f32 %v2205, %v2004
        %v2222 = vsub.f32 %v2206, %v2005
        %v2223 = vsub.f32 %v2207, %v2006
        %v2224 = vsub.f32 %v2208, %v2007
        %v2225 = vsub.f32 %v2209, %v2008
        %v2226 = vmul.f32 %v757, %v2210
        %v2227 = vmul.f32 %v757, %v2211
        %v2228 = vmul.f32 %v757, %v2212
        %v2229 = vmul.f32 %v757, %v2213
        %v2230 = vmul.f32 %v757, %v2214
        %v2231 = vmul.f32 %v757, %v2215
        %v2232 = vmul.f32 %v757, %v2216
        %v2233 = vmul.f32 %v757, %v2217
        %v2234 = vmul.f32 %v757, %v2218
        %v2235 = vmul.f32 %v757, %v2219
        %v2236 = vmul.f32 %v757, %v2220
        %v2237 = vmul.f32 %v757, %v2221
        %v2238 = vmul.f32 %v757, %v2222
        %v2239 = vmul.f32 %v757, %v2223
        %v2240 = vmul.f32 %v757, %v2224
        %v2241 = vmul.f32 %v757, %v2225
        %v2242 = vadd.f32 %v2073, %v2226
        %v2243 = vadd.f32 %v2074, %v2227
        %v2244 = vadd.f32 %v2075, %v2228
        %v2245 = vadd.f32 %v2076, %v2229
        %v2246 = vadd.f32 %v2077, %v2230
        %v2247 = vadd.f32 %v2078, %v2231
        %v2248 = vadd.f32 %v2079, %v2232
        %v2249 = vadd.f32 %v2080, %v2233
        %v2250 = vadd.f32 %v2081, %v2234
        %v2251 = vadd.f32 %v2082, %v2235
        %v2252 = vadd.f32 %v2083, %v2236
        %v2253 = vadd.f32 %v2084, %v2237
        %v2254 = vadd.f32 %v2085, %v2238
        %v2255 = vadd.f32 %v2086, %v2239
        %v2256 = vadd.f32 %v2087, %v2240
        %v2257 = vadd.f32 %v2088, %v2241
        %v2258 = vpack.c.bf16 %v2211, %v2210
        %v2259 = vpack.c.bf16 %v2213, %v2212
        %v2260 = vpack.c.bf16 %v2215, %v2214
        %v2261 = vpack.c.bf16 %v2217, %v2216
        %v2262 = vpack.c.bf16 %v2219, %v2218
        %v2263 = vpack.c.bf16 %v2221, %v2220
        %v2264 = vpack.c.bf16 %v2223, %v2222
        %v2265 = vpack.c.bf16 %v2225, %v2224
        %2266 = vmatprep.subr.bf16.mxu0 0
        %2267 = vmatpush1.bf16.msra.mxu0 %v552
        %2268 = vmatprep.subr.bf16.mxu0 0
        %2269 = vmatpush1.bf16.msra.mxu0 %v551
        %2270 = vmatprep.subr.bf16.mxu0 0
        %2271 = vmatpush1.bf16.msra.mxu0 %v550
        %2272 = vmatprep.subr.bf16.mxu0 0
        %2273 = vmatpush1.bf16.msra.mxu0 %v549
        %2274 = vmatprep.subr.bf16.mxu0 0
        %2275 = vmatpush1.bf16.msra.mxu0 %v548
        %2276 = vmatprep.subr.bf16.mxu0 0
        %2277 = vmatpush1.bf16.msra.mxu0 %v547
        %2278 = vmatprep.subr.bf16.mxu0 0
        %2279 = vmatpush1.bf16.msra.mxu0 %v546
        %2280 = vmatprep.subr.bf16.mxu0 0
        %2281 = vmatpush1.bf16.msra.mxu0 %v545
        %2282 = vmatprep.subr.bf16.mxu0 0
        %2283 = vmatpush2.bf16.msra.mxu0 0
        %2284 = vmatprep.subr.bf16.mxu0 0
        %2285 = vmatpush2.bf16.msra.mxu0 0
        %2286 = vmatprep.subr.bf16.mxu0 0
        %2287 = vmatpush2.bf16.msra.mxu0 0
        %2288 = vmatprep.subr.bf16.mxu0 0
        %2289 = vmatpush2.bf16.msra.mxu0 0
        %2290 = vmatprep.subr.bf16.mxu0 0
        %2291 = vmatpush2.bf16.msra.mxu0 0
        %2292 = vmatprep.subr.bf16.mxu0 0
        %2293 = vmatpush2.bf16.msra.mxu0 0
        %2294 = vmatprep.subr.bf16.mxu0 0
        %2295 = vmatpush2.bf16.msra.mxu0 0
        %2296 = vmatprep.subr.bf16.mxu0 0
        %2297 = vmatpush2.bf16.msra.mxu0 0
        %2298 = vmatprep.mubr.bf16.mxu0 0
        %2299 = vmatmul.mubr.bf16.gmra.mxu0 %v2258
        %v2300 = vpop.f32.mrf.mxu0
        %v2301 = vadd.f32 0.0, %v2300
        %v2302 = vpop.f32.mrf.mxu0
        %v2303 = vpop.f32.mrf.mxu0
        %v2304 = vadd.f32 0.0, %v2303
        %v2305 = vpop.f32.mrf.mxu0
        %2306 = vmatprep.mubr.bf16.mxu0 0
        %2307 = vmatmul.mubr.bf16.gmra.mxu0 %v2259
        %v2308 = vpop.f32.mrf.mxu0
        %v2309 = vadd.f32 0.0, %v2308
        %v2310 = vpop.f32.mrf.mxu0
        %v2311 = vpop.f32.mrf.mxu0
        %v2312 = vadd.f32 0.0, %v2311
        %v2313 = vpop.f32.mrf.mxu0
        %2314 = vmatprep.mubr.bf16.mxu0 0
        %2315 = vmatmul.mubr.bf16.gmra.mxu0 %v2260
        %v2316 = vpop.f32.mrf.mxu0
        %v2317 = vadd.f32 0.0, %v2316
        %v2318 = vpop.f32.mrf.mxu0
        %v2319 = vpop.f32.mrf.mxu0
        %v2320 = vadd.f32 0.0, %v2319
        %v2321 = vpop.f32.mrf.mxu0
        %2322 = vmatprep.mubr.bf16.mxu0 0
        %2323 = vmatmul.mubr.bf16.gmra.mxu0 %v2261
        %v2324 = vpop.f32.mrf.mxu0
        %v2325 = vadd.f32 0.0, %v2324
        %v2326 = vpop.f32.mrf.mxu0
        %v2327 = vpop.f32.mrf.mxu0
        %v2328 = vadd.f32 0.0, %v2327
        %v2329 = vpop.f32.mrf.mxu0
        %2330 = vmatprep.mubr.bf16.mxu0 0
        %2331 = vmatmul.mubr.bf16.gmra.mxu0 %v2262
        %v2332 = vpop.f32.mrf.mxu0
        %v2333 = vadd.f32 0.0, %v2332
        %v2334 = vpop.f32.mrf.mxu0
        %v2335 = vpop.f32.mrf.mxu0
        %v2336 = vadd.f32 0.0, %v2335
        %v2337 = vpop.f32.mrf.mxu0
        %2338 = vmatprep.mubr.bf16.mxu0 0
        %2339 = vmatmul.mubr.bf16.gmra.mxu0 %v2263
        %v2340 = vpop.f32.mrf.mxu0
        %v2341 = vadd.f32 0.0, %v2340
        %v2342 = vpop.f32.mrf.mxu0
        %v2343 = vpop.f32.mrf.mxu0
        %v2344 = vadd.f32 0.0, %v2343
        %v2345 = vpop.f32.mrf.mxu0
        %2346 = vmatprep.mubr.bf16.mxu0 0
        %2347 = vmatmul.mubr.bf16.gmra.mxu0 %v2264
        %v2348 = vpop.f32.mrf.mxu0
        %v2349 = vadd.f32 0.0, %v2348
        %v2350 = vpop.f32.mrf.mxu0
        %v2351 = vpop.f32.mrf.mxu0
        %v2352 = vadd.f32 0.0, %v2351
        %v2353 = vpop.f32.mrf.mxu0
        %2354 = vmatprep.mubr.bf16.mxu0 0
        %2355 = vmatmul.mubr.bf16.gmra.mxu0 %v2265
        %v2356 = vpop.f32.mrf.mxu0
        %v2357 = vadd.f32 0.0, %v2356
        %v2358 = vpop.f32.mrf.mxu0
        %v2359 = vpop.f32.mrf.mxu0
        %v2360 = vadd.f32 0.0, %v2359
        %v2361 = vpop.f32.mrf.mxu0
        %2362 = vdwg.mxu0
        %v2363 = vmul.f32 %v529, %v2301
        %v2364 = vmul.f32 %v530, %v2304
        %v2365 = vmul.f32 %v531, %v2309
        %v2366 = vmul.f32 %v532, %v2312
        %v2367 = vmul.f32 %v533, %v2317
        %v2368 = vmul.f32 %v534, %v2320
        %v2369 = vmul.f32 %v535, %v2325
        %v2370 = vmul.f32 %v536, %v2328
        %v2371 = vmul.f32 %v537, %v2333
        %v2372 = vmul.f32 %v538, %v2336
        %v2373 = vmul.f32 %v539, %v2341
        %v2374 = vmul.f32 %v540, %v2344
        %v2375 = vmul.f32 %v541, %v2349
        %v2376 = vmul.f32 %v542, %v2352
        %v2377 = vmul.f32 %v543, %v2357
        %v2378 = vmul.f32 %v544, %v2360
        %v2379 = vsub.f32 %v2363, %v2210
        %v2380 = vsub.f32 %v2364, %v2211
        %v2381 = vsub.f32 %v2365, %v2212
        %v2382 = vsub.f32 %v2366, %v2213
        %v2383 = vsub.f32 %v2367, %v2214
        %v2384 = vsub.f32 %v2368, %v2215
        %v2385 = vsub.f32 %v2369, %v2216
        %v2386 = vsub.f32 %v2370, %v2217
        %v2387 = vsub.f32 %v2371, %v2218
        %v2388 = vsub.f32 %v2372, %v2219
        %v2389 = vsub.f32 %v2373, %v2220
        %v2390 = vsub.f32 %v2374, %v2221
        %v2391 = vsub.f32 %v2375, %v2222
        %v2392 = vsub.f32 %v2376, %v2223
        %v2393 = vsub.f32 %v2377, %v2224
        %v2394 = vsub.f32 %v2378, %v2225
        %v2395 = vmul.f32 %v928, %v2379
        %v2396 = vmul.f32 %v928, %v2380
        %v2397 = vmul.f32 %v928, %v2381
        %v2398 = vmul.f32 %v928, %v2382
        %v2399 = vmul.f32 %v928, %v2383
        %v2400 = vmul.f32 %v928, %v2384
        %v2401 = vmul.f32 %v928, %v2385
        %v2402 = vmul.f32 %v928, %v2386
        %v2403 = vmul.f32 %v928, %v2387
        %v2404 = vmul.f32 %v928, %v2388
        %v2405 = vmul.f32 %v928, %v2389
        %v2406 = vmul.f32 %v928, %v2390
        %v2407 = vmul.f32 %v928, %v2391
        %v2408 = vmul.f32 %v928, %v2392
        %v2409 = vmul.f32 %v928, %v2393
        %v2410 = vmul.f32 %v928, %v2394
        %v2411 = vadd.f32 %v2242, %v2395
        %v2412 = vadd.f32 %v2243, %v2396
        %v2413 = vadd.f32 %v2244, %v2397
        %v2414 = vadd.f32 %v2245, %v2398
        %v2415 = vadd.f32 %v2246, %v2399
        %v2416 = vadd.f32 %v2247, %v2400
        %v2417 = vadd.f32 %v2248, %v2401
        %v2418 = vadd.f32 %v2249, %v2402
        %v2419 = vadd.f32 %v2250, %v2403
        %v2420 = vadd.f32 %v2251, %v2404
        %v2421 = vadd.f32 %v2252, %v2405
        %v2422 = vadd.f32 %v2253, %v2406
        %v2423 = vadd.f32 %v2254, %v2407
        %v2424 = vadd.f32 %v2255, %v2408
        %v2425 = vadd.f32 %v2256, %v2409
        %v2426 = vadd.f32 %v2257, %v2410
        %v2427 = vpack.c.bf16 %v2380, %v2379
        %v2428 = vpack.c.bf16 %v2382, %v2381
        %v2429 = vpack.c.bf16 %v2384, %v2383
        %v2430 = vpack.c.bf16 %v2386, %v2385
        %v2431 = vpack.c.bf16 %v2388, %v2387
        %v2432 = vpack.c.bf16 %v2390, %v2389
        %v2433 = vpack.c.bf16 %v2392, %v2391
        %v2434 = vpack.c.bf16 %v2394, %v2393
        %2435 = vmatprep.subr.bf16.mxu0 0
        %2436 = vmatpush1.bf16.msra.mxu0 %v552
        %2437 = vmatprep.subr.bf16.mxu0 0
        %2438 = vmatpush1.bf16.msra.mxu0 %v551
        %2439 = vmatprep.subr.bf16.mxu0 0
        %2440 = vmatpush1.bf16.msra.mxu0 %v550
        %2441 = vmatprep.subr.bf16.mxu0 0
        %2442 = vmatpush1.bf16.msra.mxu0 %v549
        %2443 = vmatprep.subr.bf16.mxu0 0
        %2444 = vmatpush1.bf16.msra.mxu0 %v548
        %2445 = vmatprep.subr.bf16.mxu0 0
        %2446 = vmatpush1.bf16.msra.mxu0 %v547
        %2447 = vmatprep.subr.bf16.mxu0 0
        %2448 = vmatpush1.bf16.msra.mxu0 %v546
        %2449 = vmatprep.subr.bf16.mxu0 0
        %2450 = vmatpush1.bf16.msra.mxu0 %v545
        %2451 = vmatprep.subr.bf16.mxu0 0
        %2452 = vmatpush2.bf16.msra.mxu0 0
        %2453 = vmatprep.subr.bf16.mxu0 0
        %2454 = vmatpush2.bf16.msra.mxu0 0
        %2455 = vmatprep.subr.bf16.mxu0 0
        %2456 = vmatpush2.bf16.msra.mxu0 0
        %2457 = vmatprep.subr.bf16.mxu0 0
        %2458 = vmatpush2.bf16.msra.mxu0 0
        %2459 = vmatprep.subr.bf16.mxu0 0
        %2460 = vmatpush2.bf16.msra.mxu0 0
        %2461 = vmatprep.subr.bf16.mxu0 0
        %2462 = vmatpush2.bf16.msra.mxu0 0
        %2463 = vmatprep.subr.bf16.mxu0 0
        %2464 = vmatpush2.bf16.msra.mxu0 0
        %2465 = vmatprep.subr.bf16.mxu0 0
        %2466 = vmatpush2.bf16.msra.mxu0 0
        %2467 = vmatprep.mubr.bf16.mxu0 0
        %2468 = vmatmul.mubr.bf16.gmra.mxu0 %v2427
        %v2469 = vpop.f32.mrf.mxu0
        %v2470 = vadd.f32 0.0, %v2469
        %v2471 = vpop.f32.mrf.mxu0
        %v2472 = vpop.f32.mrf.mxu0
        %v2473 = vadd.f32 0.0, %v2472
        %v2474 = vpop.f32.mrf.mxu0
        %2475 = vmatprep.mubr.bf16.mxu0 0
        %2476 = vmatmul.mubr.bf16.gmra.mxu0 %v2428
        %v2477 = vpop.f32.mrf.mxu0
        %v2478 = vadd.f32 0.0, %v2477
        %v2479 = vpop.f32.mrf.mxu0
        %v2480 = vpop.f32.mrf.mxu0
        %v2481 = vadd.f32 0.0, %v2480
        %v2482 = vpop.f32.mrf.mxu0
        %2483 = vmatprep.mubr.bf16.mxu0 0
        %2484 = vmatmul.mubr.bf16.gmra.mxu0 %v2429
        %v2485 = vpop.f32.mrf.mxu0
        %v2486 = vadd.f32 0.0, %v2485
        %v2487 = vpop.f32.mrf.mxu0
        %v2488 = vpop.f32.mrf.mxu0
        %v2489 = vadd.f32 0.0, %v2488
        %v2490 = vpop.f32.mrf.mxu0
        %2491 = vmatprep.mubr.bf16.mxu0 0
        %2492 = vmatmul.mubr.bf16.gmra.mxu0 %v2430
        %v2493 = vpop.f32.mrf.mxu0
        %v2494 = vadd.f32 0.0, %v2493
        %v2495 = vpop.f32.mrf.mxu0
        %v2496 = vpop.f32.mrf.mxu0
        %v2497 = vadd.f32 0.0, %v2496
        %v2498 = vpop.f32.mrf.mxu0
        %2499 = vmatprep.mubr.bf16.mxu0 0
        %2500 = vmatmul.mubr.bf16.gmra.mxu0 %v2431
        %v2501 = vpop.f32.mrf.mxu0
        %v2502 = vadd.f32 0.0, %v2501
        %v2503 = vpop.f32.mrf.mxu0
        %v2504 = vpop.f32.mrf.mxu0
        %v2505 = vadd.f32 0.0, %v2504
        %v2506 = vpop.f32.mrf.mxu0
        %2507 = vmatprep.mubr.bf16.mxu0 0
        %2508 = vmatmul.mubr.bf16.gmra.mxu0 %v2432
        %v2509 = vpop.f32.mrf.mxu0
        %v2510 = vadd.f32 0.0, %v2509
        %v2511 = vpop.f32.mrf.mxu0
        %v2512 = vpop.f32.mrf.mxu0
        %v2513 = vadd.f32 0.0, %v2512
        %v2514 = vpop.f32.mrf.mxu0
        %2515 = vmatprep.mubr.bf16.mxu0 0
        %2516 = vmatmul.mubr.bf16.gmra.mxu0 %v2433
        %v2517 = vpop.f32.mrf.mxu0
        %v2518 = vadd.f32 0.0, %v2517
        %v2519 = vpop.f32.mrf.mxu0
        %v2520 = vpop.f32.mrf.mxu0
        %v2521 = vadd.f32 0.0, %v2520
        %v2522 = vpop.f32.mrf.mxu0
        %2523 = vmatprep.mubr.bf16.mxu0 0
        %2524 = vmatmul.mubr.bf16.gmra.mxu0 %v2434
        %v2525 = vpop.f32.mrf.mxu0
        %v2526 = vadd.f32 0.0, %v2525
        %v2527 = vpop.f32.mrf.mxu0
        %v2528 = vpop.f32.mrf.mxu0
        %v2529 = vadd.f32 0.0, %v2528
        %v2530 = vpop.f32.mrf.mxu0
        %2531 = vdwg.mxu0
        %v2532 = vmul.f32 %v529, %v2470
        %v2533 = vmul.f32 %v530, %v2473
        %v2534 = vmul.f32 %v531, %v2478
        %v2535 = vmul.f32 %v532, %v2481
        %v2536 = vmul.f32 %v533, %v2486
        %v2537 = vmul.f32 %v534, %v2489
        %v2538 = vmul.f32 %v535, %v2494
        %v2539 = vmul.f32 %v536, %v2497
        %v2540 = vmul.f32 %v537, %v2502
        %v2541 = vmul.f32 %v538, %v2505
        %v2542 = vmul.f32 %v539, %v2510
        %v2543 = vmul.f32 %v540, %v2513
        %v2544 = vmul.f32 %v541, %v2518
        %v2545 = vmul.f32 %v542, %v2521
        %v2546 = vmul.f32 %v543, %v2526
        %v2547 = vmul.f32 %v544, %v2529
        %v2548 = vsub.f32 %v2532, %v2379
        %v2549 = vsub.f32 %v2533, %v2380
        %v2550 = vsub.f32 %v2534, %v2381
        %v2551 = vsub.f32 %v2535, %v2382
        %v2552 = vsub.f32 %v2536, %v2383
        %v2553 = vsub.f32 %v2537, %v2384
        %v2554 = vsub.f32 %v2538, %v2385
        %v2555 = vsub.f32 %v2539, %v2386
        %v2556 = vsub.f32 %v2540, %v2387
        %v2557 = vsub.f32 %v2541, %v2388
        %v2558 = vsub.f32 %v2542, %v2389
        %v2559 = vsub.f32 %v2543, %v2390
        %v2560 = vsub.f32 %v2544, %v2391
        %v2561 = vsub.f32 %v2545, %v2392
        %v2562 = vsub.f32 %v2546, %v2393
        %v2563 = vsub.f32 %v2547, %v2394
        %v2564 = vmul.f32 %v1099, %v2548
        %v2565 = vmul.f32 %v1099, %v2549
        %v2566 = vmul.f32 %v1099, %v2550
        %v2567 = vmul.f32 %v1099, %v2551
        %v2568 = vmul.f32 %v1099, %v2552
        %v2569 = vmul.f32 %v1099, %v2553
        %v2570 = vmul.f32 %v1099, %v2554
        %v2571 = vmul.f32 %v1099, %v2555
        %v2572 = vmul.f32 %v1099, %v2556
        %v2573 = vmul.f32 %v1099, %v2557
        %v2574 = vmul.f32 %v1099, %v2558
        %v2575 = vmul.f32 %v1099, %v2559
        %v2576 = vmul.f32 %v1099, %v2560
        %v2577 = vmul.f32 %v1099, %v2561
        %v2578 = vmul.f32 %v1099, %v2562
        %v2579 = vmul.f32 %v1099, %v2563
        %v2580 = vadd.f32 %v2411, %v2564
        %v2581 = vadd.f32 %v2412, %v2565
        %v2582 = vadd.f32 %v2413, %v2566
        %v2583 = vadd.f32 %v2414, %v2567
        %v2584 = vadd.f32 %v2415, %v2568
        %v2585 = vadd.f32 %v2416, %v2569
        %v2586 = vadd.f32 %v2417, %v2570
        %v2587 = vadd.f32 %v2418, %v2571
        %v2588 = vadd.f32 %v2419, %v2572
        %v2589 = vadd.f32 %v2420, %v2573
        %v2590 = vadd.f32 %v2421, %v2574
        %v2591 = vadd.f32 %v2422, %v2575
        %v2592 = vadd.f32 %v2423, %v2576
        %v2593 = vadd.f32 %v2424, %v2577
        %v2594 = vadd.f32 %v2425, %v2578
        %v2595 = vadd.f32 %v2426, %v2579
        %v2596 = vpack.c.bf16 %v2581, %v2580
        %v2597 = vpack.c.bf16 %v2583, %v2582
        %v2598 = vpack.c.bf16 %v2585, %v2584
        %v2599 = vpack.c.bf16 %v2587, %v2586
        %v2600 = vpack.c.bf16 %v2589, %v2588
        %v2601 = vpack.c.bf16 %v2591, %v2590
        %v2602 = vpack.c.bf16 %v2593, %v2592
        %v2603 = vpack.c.bf16 %v2595, %v2594
        %2604 = vmatprep.subr.bf16.mxu0 0
        %2605 = vmatpush1.bf16.msra.mxu0 %v552
        %2606 = vmatprep.subr.bf16.mxu0 0
        %2607 = vmatpush1.bf16.msra.mxu0 %v551
        %2608 = vmatprep.subr.bf16.mxu0 0
        %2609 = vmatpush1.bf16.msra.mxu0 %v550
        %2610 = vmatprep.subr.bf16.mxu0 0
        %2611 = vmatpush1.bf16.msra.mxu0 %v549
        %2612 = vmatprep.subr.bf16.mxu0 0
        %2613 = vmatpush1.bf16.msra.mxu0 %v548
        %2614 = vmatprep.subr.bf16.mxu0 0
        %2615 = vmatpush1.bf16.msra.mxu0 %v547
        %2616 = vmatprep.subr.bf16.mxu0 0
        %2617 = vmatpush1.bf16.msra.mxu0 %v546
        %2618 = vmatprep.subr.bf16.mxu0 0
        %2619 = vmatpush1.bf16.msra.mxu0 %v545
        %2620 = vmatprep.subr.bf16.mxu0 0
        %2621 = vmatpush2.bf16.msra.mxu0 0
        %2622 = vmatprep.subr.bf16.mxu0 0
        %2623 = vmatpush2.bf16.msra.mxu0 0
        %2624 = vmatprep.subr.bf16.mxu0 0
        %2625 = vmatpush2.bf16.msra.mxu0 0
        %2626 = vmatprep.subr.bf16.mxu0 0
        %2627 = vmatpush2.bf16.msra.mxu0 0
        %2628 = vmatprep.subr.bf16.mxu0 0
        %2629 = vmatpush2.bf16.msra.mxu0 0
        %2630 = vmatprep.subr.bf16.mxu0 0
        %2631 = vmatpush2.bf16.msra.mxu0 0
        %2632 = vmatprep.subr.bf16.mxu0 0
        %2633 = vmatpush2.bf16.msra.mxu0 0
        %2634 = vmatprep.subr.bf16.mxu0 0
        %2635 = vmatpush2.bf16.msra.mxu0 0
        %2636 = vmatprep.mubr.bf16.mxu0 0
        %2637 = vmatmul.mubr.bf16.gmra.mxu0 %v2596
        %v2638 = vpop.f32.mrf.mxu0
        %v2639 = vadd.f32 0.0, %v2638
        %v2640 = vpop.f32.mrf.mxu0
        %v2641 = vpop.f32.mrf.mxu0
        %v2642 = vadd.f32 0.0, %v2641
        %v2643 = vpop.f32.mrf.mxu0
        %2644 = vmatprep.mubr.bf16.mxu0 0
        %2645 = vmatmul.mubr.bf16.gmra.mxu0 %v2597
        %v2646 = vpop.f32.mrf.mxu0
        %v2647 = vadd.f32 0.0, %v2646
        %v2648 = vpop.f32.mrf.mxu0
        %v2649 = vpop.f32.mrf.mxu0
        %v2650 = vadd.f32 0.0, %v2649
        %v2651 = vpop.f32.mrf.mxu0
        %2652 = vmatprep.mubr.bf16.mxu0 0
        %2653 = vmatmul.mubr.bf16.gmra.mxu0 %v2598
        %v2654 = vpop.f32.mrf.mxu0
        %v2655 = vadd.f32 0.0, %v2654
        %v2656 = vpop.f32.mrf.mxu0
        %v2657 = vpop.f32.mrf.mxu0
        %v2658 = vadd.f32 0.0, %v2657
        %v2659 = vpop.f32.mrf.mxu0
        %2660 = vmatprep.mubr.bf16.mxu0 0
        %2661 = vmatmul.mubr.bf16.gmra.mxu0 %v2599
        %v2662 = vpop.f32.mrf.mxu0
        %v2663 = vadd.f32 0.0, %v2662
        %v2664 = vpop.f32.mrf.mxu0
        %v2665 = vpop.f32.mrf.mxu0
        %v2666 = vadd.f32 0.0, %v2665
        %v2667 = vpop.f32.mrf.mxu0
        %2668 = vmatprep.mubr.bf16.mxu0 0
        %2669 = vmatmul.mubr.bf16.gmra.mxu0 %v2600
        %v2670 = vpop.f32.mrf.mxu0
        %v2671 = vadd.f32 0.0, %v2670
        %v2672 = vpop.f32.mrf.mxu0
        %v2673 = vpop.f32.mrf.mxu0
        %v2674 = vadd.f32 0.0, %v2673
        %v2675 = vpop.f32.mrf.mxu0
        %2676 = vmatprep.mubr.bf16.mxu0 0
        %2677 = vmatmul.mubr.bf16.gmra.mxu0 %v2601
        %v2678 = vpop.f32.mrf.mxu0
        %v2679 = vadd.f32 0.0, %v2678
        %v2680 = vpop.f32.mrf.mxu0
        %v2681 = vpop.f32.mrf.mxu0
        %v2682 = vadd.f32 0.0, %v2681
        %v2683 = vpop.f32.mrf.mxu0
        %2684 = vmatprep.mubr.bf16.mxu0 0
        %2685 = vmatmul.mubr.bf16.gmra.mxu0 %v2602
        %v2686 = vpop.f32.mrf.mxu0
        %v2687 = vadd.f32 0.0, %v2686
        %v2688 = vpop.f32.mrf.mxu0
        %v2689 = vpop.f32.mrf.mxu0
        %v2690 = vadd.f32 0.0, %v2689
        %v2691 = vpop.f32.mrf.mxu0
        %2692 = vmatprep.mubr.bf16.mxu0 0
        %2693 = vmatmul.mubr.bf16.gmra.mxu0 %v2603
        %v2694 = vpop.f32.mrf.mxu0
        %v2695 = vadd.f32 0.0, %v2694
        %v2696 = vpop.f32.mrf.mxu0
        %v2697 = vpop.f32.mrf.mxu0
        %v2698 = vadd.f32 0.0, %v2697
        %v2699 = vpop.f32.mrf.mxu0
        %2700 = vdwg.mxu0
        %v2701 = vmul.f32 %v529, %v2639
        %v2702 = vmul.f32 %v530, %v2642
        %v2703 = vmul.f32 %v531, %v2647
        %v2704 = vmul.f32 %v532, %v2650
        %v2705 = vmul.f32 %v533, %v2655
        %v2706 = vmul.f32 %v534, %v2658
        %v2707 = vmul.f32 %v535, %v2663
        %v2708 = vmul.f32 %v536, %v2666
        %v2709 = vmul.f32 %v537, %v2671
        %v2710 = vmul.f32 %v538, %v2674
        %v2711 = vmul.f32 %v539, %v2679
        %v2712 = vmul.f32 %v540, %v2682
        %v2713 = vmul.f32 %v541, %v2687
        %v2714 = vmul.f32 %v542, %v2690
        %v2715 = vmul.f32 %v543, %v2695
        %v2716 = vmul.f32 %v544, %v2698
        %v2717 = vsub.f32 %v2701, %v2580
        %v2718 = vsub.f32 %v2702, %v2581
        %v2719 = vsub.f32 %v2703, %v2582
        %v2720 = vsub.f32 %v2704, %v2583
        %v2721 = vsub.f32 %v2705, %v2584
        %v2722 = vsub.f32 %v2706, %v2585
        %v2723 = vsub.f32 %v2707, %v2586
        %v2724 = vsub.f32 %v2708, %v2587
        %v2725 = vsub.f32 %v2709, %v2588
        %v2726 = vsub.f32 %v2710, %v2589
        %v2727 = vsub.f32 %v2711, %v2590
        %v2728 = vsub.f32 %v2712, %v2591
        %v2729 = vsub.f32 %v2713, %v2592
        %v2730 = vsub.f32 %v2714, %v2593
        %v2731 = vsub.f32 %v2715, %v2594
        %v2732 = vsub.f32 %v2716, %v2595
        %v2733 = vsub.f32 %v2717, %v553
        %v2734 = vsub.f32 %v2718, %v554
        %v2735 = vsub.f32 %v2719, %v555
        %v2736 = vsub.f32 %v2720, %v556
        %v2737 = vsub.f32 %v2721, %v557
        %v2738 = vsub.f32 %v2722, %v558
        %v2739 = vsub.f32 %v2723, %v559
        %v2740 = vsub.f32 %v2724, %v560
        %v2741 = vsub.f32 %v2725, %v561
        %v2742 = vsub.f32 %v2726, %v562
        %v2743 = vsub.f32 %v2727, %v563
        %v2744 = vsub.f32 %v2728, %v564
        %v2745 = vsub.f32 %v2729, %v565
        %v2746 = vsub.f32 %v2730, %v566
        %v2747 = vsub.f32 %v2731, %v567
        %v2748 = vsub.f32 %v2732, %v568
        %v2749 = vmul.f32 %v2733, %v2733
        %v2750 = vmul.f32 %v2734, %v2734
        %v2751 = vmul.f32 %v2735, %v2735
        %v2752 = vmul.f32 %v2736, %v2736
        %v2753 = vmul.f32 %v2737, %v2737
        %v2754 = vmul.f32 %v2738, %v2738
        %v2755 = vmul.f32 %v2739, %v2739
        %v2756 = vmul.f32 %v2740, %v2740
        %v2757 = vmul.f32 %v2741, %v2741
        %v2758 = vmul.f32 %v2742, %v2742
        %v2759 = vmul.f32 %v2743, %v2743
        %v2760 = vmul.f32 %v2744, %v2744
        %v2761 = vmul.f32 %v2745, %v2745
        %v2762 = vmul.f32 %v2746, %v2746
        %v2763 = vmul.f32 %v2747, %v2747
        %v2764 = vmul.f32 %v2748, %v2748
        %v2765 = vmul.f32 %v2749, 16.0
        %v2766 = vmul.f32 %v2750, 16.0
        %v2767 = vmul.f32 %v2751, 16.0
        %v2768 = vmul.f32 %v2752, 16.0
        %v2769 = vmul.f32 %v2753, 16.0
        %v2770 = vmul.f32 %v2754, 16.0
        %v2771 = vmul.f32 %v2755, 16.0
        %v2772 = vmul.f32 %v2756, 16.0
        %v2773 = vmul.f32 %v2757, 16.0
        %v2774 = vmul.f32 %v2758, 16.0
        %v2775 = vmul.f32 %v2759, 16.0
        %v2776 = vmul.f32 %v2760, 16.0
        %v2777 = vmul.f32 %v2761, 16.0
        %v2778 = vmul.f32 %v2762, 16.0
        %v2779 = vmul.f32 %v2763, 16.0
        %v2780 = vmul.f32 %v2764, 16.0
        %v2781 = vadd.f32 %v2041, %v2765
        %v2782 = vadd.f32 %v2042, %v2766
        %v2783 = vadd.f32 %v2043, %v2767
        %v2784 = vadd.f32 %v2044, %v2768
        %v2785 = vadd.f32 %v2045, %v2769
        %v2786 = vadd.f32 %v2046, %v2770
        %v2787 = vadd.f32 %v2047, %v2771
        %v2788 = vadd.f32 %v2048, %v2772
        %v2789 = vadd.f32 %v2049, %v2773
        %v2790 = vadd.f32 %v2050, %v2774
        %v2791 = vadd.f32 %v2051, %v2775
        %v2792 = vadd.f32 %v2052, %v2776
        %v2793 = vadd.f32 %v2053, %v2777
        %v2794 = vadd.f32 %v2054, %v2778
        %v2795 = vadd.f32 %v2055, %v2779
        %v2796 = vadd.f32 %v2056, %v2780
        %v2797 = vadd.f32 %v2781, %v2782
        %v2798 = vadd.f32 %v2797, %v2783
        %v2799 = vadd.f32 %v2798, %v2784
        %v2800 = vadd.f32 %v2799, %v2785
        %v2801 = vadd.f32 %v2800, %v2786
        %v2802 = vadd.f32 %v2801, %v2787
        %v2803 = vadd.f32 %v2802, %v2788
        %v2804 = vadd.f32 %v2803, %v2789
        %v2805 = vadd.f32 %v2804, %v2790
        %v2806 = vadd.f32 %v2805, %v2791
        %v2807 = vadd.f32 %v2806, %v2792
        %v2808 = vadd.f32 %v2807, %v2793
        %v2809 = vadd.f32 %v2808, %v2794
        %v2810 = vadd.f32 %v2809, %v2795
        %v2811 = vadd.f32 %v2810, %v2796
        %v2812 = vrot.slane %v2811, 4
        %v2813 = vadd.f32 %v2811, %v2812
        %v2814 = vrot.slane %v2813, 2
        %v2815 = vadd.f32 %v2813, %v2814
        %v2816 = vrot.slane %v2815, 1
        %v2817 = vadd.f32 %v2815, %v2816
        %2818 = vst [vmem:[%s309] sm:$0x1] %v2817
        %s2819 = sand.u32 %s149, 1
        %s2820 = scalar_lea.sflag [#allocation4], %s2819
        %s2821 = sand.u32 %s149, 1
        %s2822 = scalar_lea.vmem [#allocation10], %s2821
        // Predicated region
        $region57: #{tpu_custom_call.1} parent=39 // pred_check
          %p2823 = pneg %p159
        $region58: #{tpu_custom_call.1} parent=39 // pred_check_branch
          %2825 = sbr.rel (%p2823) target = $region60
        $region59: #{tpu_custom_call.1} parent=39 // pred_region
          %s2827 = ssub.s32 16, 16
          %2828 = vsyncadd %s2820, %s2827
          %s2829 = smul.addr %s26, 16
          %s2830 = scalar_lea.hbm %s5, %s2829
          %s2832 = sshll.u32 %s2822, 4
          %s2833 = int_to_ptr.vmem [resolvable:$true] %s2832
          %2835 = dma.vmem_to_hbm [thread:$0]  %s2833, 16, %s2830, %s2820
        $region60: #{tpu_custom_call.1} parent=39 // pred_fallthru
          _
      $region40: #{tpu_custom_call.1} parent=5 // pred_fallthru
        _
      %p2836 = scmp.le.s32.totalorder 2, %s21
      // Predicated region
      $region61: #{tpu_custom_call.1} parent=5 // pred_check
        %p2837 = pneg %p2836
      $region62: #{tpu_custom_call.1} parent=5 // pred_check_branch
        %2839 = sbr.rel (%p2837) target = $region64
      $region63: #{tpu_custom_call.1} parent=5 // pred_region
        %s2840 = ssub.s32 %s21, 2
        // Predicated region
        $region65: #{tpu_custom_call.1} parent=63 // pred_check
          %p2841 = pneg %p165
        $region66: #{tpu_custom_call.1} parent=63 // pred_check_branch
          %2843 = sbr.rel (%p2841) target = $region68
        $region67: #{tpu_custom_call.1} parent=63 // pred_region
          %s2844 = sand.u32 %s150, 1
          %s2845 = scalar_lea.sflag [#allocation4], %s2844
          %s2846 = sand.u32 %s150, 1
          %s2847 = scalar_lea.vmem [#allocation10], %s2846
          %2848 = dma.done %s2845, 16
        $region68: #{tpu_custom_call.1} parent=63 // pred_fallthru
          _
      $region64: #{tpu_custom_call.1} parent=5 // pred_fallthru
        _
    $region6: #{tpu_custom_call.1} parent=1 // loop_footer
      %s25 = sadd.s32 1, %s21
    $region7: #{tpu_custom_call.1} parent=1 // loop_footer_branch
      %20 = sbr.rel target = $region3
    $region8: #{tpu_custom_call.1} parent=1 // loop_exit
      _
    %2849 = vsyncpa [#allocation3], 1
    %s2850 = scalar_lea.sflag [#allocation3], 1
    %2851 = vsyncpa %s2850, 1
    %2852 = vsyncpa [#allocation7], 1
    %s2853 = scalar_lea.sflag [#allocation7], 1
    %2854 = vsyncpa %s2853, 1
    %2855 = vsyncpa [#allocation4], 1
    %s2856 = scalar_lea.sflag [#allocation4], 1
    %2857 = vsyncpa %s2856, 1
    %2858 = vsyncpa [#allocation5], 1
    %s2859 = scalar_lea.sflag [#allocation5], 1
    %2860 = vsyncpa %s2859, 1

</llo_original>
